<compile_context>
chip_gen: v6e
topology: v6e:2x2x1
jax: 0.10.0
libtpu: 0.0.40
codegen_flags: <defaults>
</compile_context>

<pallas_src>
import functools
import math

import jax
import jax.numpy as jnp
from jax import lax
from jax.experimental import pallas as pl
from jax.experimental.pallas import tpu as pltpu


def _centroids_kernel(thr_ref, x_ref, coord_ref, o_ref, *, hw_inv):
    """Processes TM feature maps (rows of x_ref, each H*W wide, lane-dense).

    Emits per map the raw weighted moments [s, sx, sy, sxx, syy, sxy, 0, 0]
    about the centered coordinate origin; everything downstream (centroids,
    central moments, diameters, arctan) is finalized in the JAX wrapper."""
    x = x_ref[...]                                        # (TM, HW) f32

    # ---- Normalize2d #1 : the only XLU reductions left in the kernel ----
    mn = jnp.min(x, axis=1, keepdims=True)                # (TM, 1)
    mx = jnp.max(x, axis=1, keepdims=True)                # (TM, 1)
    rng = mx - mn
    nz = rng != 0.0
    inv_rng = jnp.where(nz, 1.0 / jnp.where(nz, rng, 1.0), 0.0)   # per-row only
    xn = (x - mn) * inv_rng                               # row min==0, max==1 (or all-0)

    coord = coord_ref[...]                                # (HW, 8), resident

    # ---- mean-sum on the MXU (column 0 of coord is all-ones) ----
    pre = jnp.dot(xn, coord, precision=lax.Precision.HIGHEST,
                  preferred_element_type=jnp.float32)     # (TM, 8)
    mean = pre[:, 0:1] * hw_inv
    xn = jnp.where(mean < 0.5, xn, 1.0 - xn)              # invert "bright" maps

    # ---- soft threshold + Normalize2d #2, fused algebraically ----
    # After normalize #1 (and the flip) row-min == 0, row-max == 1, and
    # thr = sigmoid(.) in (0,1); hence relu(xn-thr)+thr has min == thr and
    # max == 1, so the second normalization is exactly relu(xn-thr)/(1-thr).
    thr = thr_ref[...]                                    # (TM, 1)
    scale = jnp.where(nz, 100.0 / (1.0 - thr), 0.0)       # per-row column
    xw = jnp.maximum(xn - thr, 0.0) * scale

    # ---- all five weighted raw moments in one MXU matmul ----
    o_ref[...] = jnp.dot(xw, coord, precision=lax.Precision.HIGHEST,
                         preferred_element_type=jnp.float32)      # (TM, 8)


def centroids2d(x, thr_param, *, sigma=2.0):
    """Pallas implementation of Centroids2d.forward.  x: (B, C, H, W) -> (B, C, 5)."""
    B, C, H, W = x.shape
    BC = B * C
    HW = H * W

    # ---- tile size: TM maps per grid step ----
    # v5e-safe: keep the double-buffered input tile + materialized matmul
    # operand well under the 16 MiB default scoped-VMEM limit (~2 MiB tiles).
    tm_cap = max(8, (((2 * 1024 * 1024) // (HW * 4)) // 8) * 8)
    bc8 = -(-BC // 8) * 8
    # v7x: keep >= 4 grid steps (when there is enough work) so the "parallel"
    # axis actually shards across both TensorCores.
    tm_split = max(8, ((bc8 // 4) // 8) * 8)
    TM = min(tm_cap, tm_split)
    BC_pad = -(-BC // TM) * TM

    # ---- lane-dense flattening + zero padding of the map axis ----
    x_flat = x.reshape(BC, HW).astype(jnp.float32)
    if BC_pad != BC:
        x_flat = jnp.pad(x_flat, ((0, BC_pad - BC), (0, 0)))

    # thr.sigmoid().repeat(b, 1, 1) -> per-map threshold column (BC_pad, 1)
    thr_per_map = jnp.tile(jax.nn.sigmoid(thr_param.reshape(C).astype(jnp.float32)), (B,))
    thr_per_map = jnp.pad(thr_per_map, (0, BC_pad - BC)).reshape(BC_pad, 1)

    # ---- resident coordinate matrix, centered to avoid E[c^2]-mean^2 cancel ----
    # columns: [1, xc, yc, xc^2, yc^2, xc*yc, 0, 0] with xc = w-(W-1)/2, yc = h-(H-1)/2
    ox = (W - 1) / 2.0
    oy = (H - 1) / 2.0
    xc = jnp.tile(jnp.arange(W, dtype=jnp.float32), (H,)) - ox      # w = idx % W
    yc = jnp.repeat(jnp.arange(H, dtype=jnp.float32), W) - oy       # h = idx // W
    coord = jnp.stack(
        [jnp.ones((HW,), jnp.float32), xc, yc, xc * xc, yc * yc, xc * yc,
         jnp.zeros((HW,), jnp.float32), jnp.zeros((HW,), jnp.float32)],
        axis=1,
    )                                                               # (HW, 8)

    kernel = functools.partial(_centroids_kernel, hw_inv=1.0 / float(HW))
    moments = pl.pallas_call(
        kernel,
        out_shape=jax.ShapeDtypeStruct((BC_pad, 8), jnp.float32),
        grid=(BC_pad // TM,),
        in_specs=[
            pl.BlockSpec((TM, 1), lambda i: (i, 0)),                # thr column
            pl.BlockSpec((TM, HW), lambda i: (i, 0)),               # maps
            pl.BlockSpec((HW, 8), lambda i: (0, 0)),                # coords (resident)
        ],
        out_specs=pl.BlockSpec((TM, 8), lambda i: (i, 0)),
        compiler_params=pltpu.CompilerParams(dimension_semantics=("parallel",)),
    )(thr_per_map, x_flat, coord)

    # ---- finalization, lane-dense on the (BC, 8) slab in plain JAX ----
    moments = moments[:BC]
    s = moments[:, 0]
    sx, sy = moments[:, 1], moments[:, 2]
    sxx, syy, sxy = moments[:, 3], moments[:, 4], moments[:, 5]

    nz = s != 0.0
    inv_s = jnp.where(nz, 1.0 / jnp.where(nz, s, 1.0), 0.0)
    cxc = sx * inv_s                              # centroid about centered origin
    cyc = sy * inv_s
    cx = jnp.where(nz, cxc + ox, W / 2.0)
    cy = jnp.where(nz, cyc + oy, H / 2.0)
    # second central moments (origin-shift invariant): E[c^2] - mean^2
    sm_x = jnp.where(nz, sxx * inv_s - cxc * cxc, 0.0)
    sm_y = jnp.where(nz, syy * inv_s - cyc * cyc, 0.0)
    sm_xy = jnp.where(nz, sxy * inv_s - cxc * cyc, 0.0)

    diff = sm_x - sm_y
    sq1 = jnp.maximum(diff * diff + 4.0 * sm_xy * sm_xy, 0.0)
    r1 = jnp.sqrt(sq1)
    sgn = jnp.sign(diff)
    sq_x2 = jnp.maximum(sm_x + sm_y + sgn * r1, 0.0)
    sq_y2 = jnp.maximum(sm_x + sm_y - sgn * r1, 0.0)
    a2 = jnp.abs(sm_xy * sm_xy)
    sq_x3 = jnp.maximum(sm_x * sm_x + sm_y * sm_y + 2.0 * a2, 0.0)
    sq_y3 = jnp.maximum(sm_x * sm_x + sm_y * sm_y - 2.0 * a2, 0.0)

    coef = float(sigma) * math.sqrt(2.0)
    neq = diff != 0.0
    d_az_x = jnp.where(neq, coef * jnp.sqrt(sq_x2), coef * jnp.sqrt(sq_x3))
    d_az_y = jnp.where(neq, coef * jnp.sqrt(sq_y2), coef * jnp.sqrt(sq_y3))
    # TODO(synk): torch.atan has no guaranteed Mosaic vector lowering; the angle
    # finalization is O(B*C) scalars and is done in plain JAX here.
    az = jnp.where(neq,
                   jnp.arctan(2.0 * sm_xy / jnp.where(neq, diff, 1.0)) * 0.5,
                   jnp.sign(sm_xy) * jnp.float32(math.pi))

    out = jnp.stack([cx * (1.0 / W), cy * (1.0 / H), az,
                     d_az_x * (1.0 / W), d_az_y * (1.0 / H)], axis=1)  # (B*C, 5)
    return out.reshape(B, C, 5)


def centroids2d_ref(x, thr_param, *, sigma=2.0):
    """Pure-JAX reference replicating the PyTorch semantics (for validation)."""
    B, C, H, W = x.shape
    BC = B * C
    xf = x.reshape(BC, H, W).astype(jnp.float32)

    def normalize(v):
        mn = v.min(axis=(1, 2), keepdims=True)
        mx = v.max(axis=(1, 2), keepdims=True)
        d = mx - mn
        return jnp.where(d != 0.0, (v - mn) / d, 0.0)

    xf = normalize(xf)
    xf = jnp.where(xf.mean(axis=(1, 2), keepdims=True) < 0.5, xf, 1.0 - xf)
    thr = jnp.tile(jax.nn.sigmoid(thr_param.reshape(C)), (B,))[:, None, None]
    xf = jnp.maximum(xf - thr, 0.0) + thr
    xf = normalize(xf) * 100.0

    xc = jnp.broadcast_to(jnp.arange(W, dtype=jnp.float32)[None, None, :], (BC, H, W))
    yc = jnp.broadcast_to(jnp.arange(H, dtype=jnp.float32)[None, :, None], (BC, H, W))
    s = xf.sum(axis=(1, 2))
    nz = s != 0.0
    safe_s = jnp.where(nz, s, 1.0)
    cx = jnp.where(nz, (xf * xc).sum(axis=(1, 2)) / safe_s, W / 2.0)
    cy = jnp.where(nz, (xf * yc).sum(axis=(1, 2)) / safe_s, H / 2.0)
    dx = xc - cx[:, None, None]
    dy = yc - cy[:, None, None]
    sm_x = jnp.where(nz, (xf * dx * dx).sum(axis=(1, 2)) / safe_s, 0.0)
    sm_y = jnp.where(nz, (xf * dy * dy).sum(axis=(1, 2)) / safe_s, 0.0)
    sm_xy = jnp.where(nz, (xf * dx * dy).sum(axis=(1, 2)) / safe_s, 0.0)

    sq1 = jnp.maximum((sm_x - sm_y) ** 2 + 4.0 * sm_xy ** 2, 0.0)
    sgn = jnp.sign(sm_x - sm_y)
    sq_x2 = jnp.maximum(sm_x + sm_y + sgn * jnp.sqrt(sq1), 0.0)
    sq_y2 = jnp.maximum(sm_x + sm_y - sgn * jnp.sqrt(sq1), 0.0)
    sq_x3 = jnp.maximum(sm_x ** 2 + sm_y ** 2 + 2.0 * jnp.abs(sm_xy ** 2), 0.0)
    sq_y3 = jnp.maximum(sm_x ** 2 + sm_y ** 2 - 2.0 * jnp.abs(sm_xy ** 2), 0.0)
    coef = float(sigma) * math.sqrt(2.0)
    neq = sm_x != sm_y
    az = jnp.where(neq, jnp.arctan(2.0 * sm_xy / jnp.where(neq, sm_x - sm_y, 1.0)) * 0.5,
                   jnp.sign(sm_xy) * jnp.float32(math.pi))
    dax = jnp.where(neq, coef * jnp.sqrt(sq_x2), coef * jnp.sqrt(sq_x3))
    day = jnp.where(neq, coef * jnp.sqrt(sq_y2), coef * jnp.sqrt(sq_y3))
    return jnp.stack([cx / W, cy / H, az, dax / W, day / H], axis=1).reshape(B, C, 5)


if __name__ == "__main__":
    B, C, H, W = 2, 4, 16, 16
    key = jax.random.PRNGKey(0)
    # Lognormal-ish maps keep the normalized mean well away from the 0.5 branch
    # boundary so kernel/reference reduction-order differences can't flip branches.
    x = jnp.exp(jax.random.normal(key, (B, C, H, W), dtype=jnp.float32))
    # Deterministic parameter init exactly as in __init__: ones(C,1,1) * -10
    thr_param = jnp.ones((C, 1, 1), jnp.float32) * -10.0

    out = jax.block_until_ready(centroids2d(x, thr_param, sigma=2.0))
    ref = jax.block_until_ready(centroids2d_ref(x, thr_param, sigma=2.0))

    assert out.shape == (B, C, 5), out.shape
    assert bool(jnp.all(jnp.isfinite(out)))
    assert bool(jnp.allclose(out, ref, rtol=1e-4, atol=1e-4)), (out, ref)
    print("KERNEL_OK")
</pallas_src>

<mosaic_0001>
module attributes {stable_mosaic.version = 11 : i64} {
  func.func @_centroids_kernel(%arg0: i32, %arg1: memref<8x1xf32, #tpu.memory_space<vmem>>, %arg2: memref<8x256xf32, #tpu.memory_space<vmem>>, %arg3: memref<256x8xf32, #tpu.memory_space<vmem>>, %arg4: memref<8x8xf32, #tpu.memory_space<vmem>>) attributes {dimension_semantics = [#tpu.dimension_semantics<parallel>], iteration_bounds = array<i64: 1>, scalar_prefetch = 0 : i64, scratch_operands = 0 : i64, tpu.core_type = #tpu.core_type<tc>, window_params = [{transform_indices = @transform_0, window_bounds = array<i64: 8, 1>}, {transform_indices = @transform_1, window_bounds = array<i64: 8, 256>}, {pipeline_mode = #tpu.pipeline_mode<synchronous>, transform_indices = @transform_2, window_bounds = array<i64: 256, 8>}, {transform_indices = @transform_3, window_bounds = array<i64: 8, 8>}]} {
    %c0 = arith.constant 0 : index
    %c0_0 = arith.constant 0 : index
    %0 = vector.load %arg2[%c0, %c0_0] : memref<8x256xf32, #tpu.memory_space<vmem>>, vector<8x256xf32>
    %cst = arith.constant dense<0x7F800000> : vector<8xf32>
    %1 = vector.multi_reduction <minimumf>, %0, %cst [1] : vector<8x256xf32> to vector<8xf32>
    %2 = vector.shape_cast %1 : vector<8xf32> to vector<8x1xf32>
    %cst_1 = arith.constant dense<0xFF800000> : vector<8xf32>
    %3 = vector.multi_reduction <maximumf>, %0, %cst_1 [1] : vector<8x256xf32> to vector<8xf32>
    %4 = vector.shape_cast %3 : vector<8xf32> to vector<8x1xf32>
    %5 = arith.subf %4, %2 : vector<8x1xf32>
    %cst_2 = arith.constant 0.000000e+00 : f32
    %6 = vector.broadcast %cst_2 : f32 to vector<8x1xf32>
    %7 = arith.cmpf one, %5, %6 : vector<8x1xf32>
    %cst_3 = arith.constant 1.000000e+00 : f32
    %8 = vector.broadcast %cst_3 : f32 to vector<8x1xf32>
    %9 = arith.select %7, %5, %8 : vector<8x1xi1>, vector<8x1xf32>
    %cst_4 = arith.constant 1.000000e+00 : f32
    %10 = vector.broadcast %cst_4 : f32 to vector<8x1xf32>
    %11 = arith.divf %10, %9 : vector<8x1xf32>
    %cst_5 = arith.constant 0.000000e+00 : f32
    %12 = vector.broadcast %cst_5 : f32 to vector<8x1xf32>
    %13 = arith.select %7, %11, %12 : vector<8x1xi1>, vector<8x1xf32>
    %14 = vector.broadcast %2 : vector<8x1xf32> to vector<8x256xf32>
    %15 = arith.subf %0, %14 : vector<8x256xf32>
    %16 = vector.broadcast %13 : vector<8x1xf32> to vector<8x256xf32>
    %17 = arith.mulf %15, %16 : vector<8x256xf32>
    %c0_6 = arith.constant 0 : index
    %c0_7 = arith.constant 0 : index
    %18 = vector.load %arg3[%c0_6, %c0_7] : memref<256x8xf32, #tpu.memory_space<vmem>>, vector<256x8xf32>
    %cst_8 = arith.constant dense<0.000000e+00> : vector<8x8xf32>
    %19 = tpu.matmul %17, %18, %cst_8 {dimension_numbers = #tpu.dot_dimension_numbers<[1], [0], [0], [1], [0, 0, 1, 1], [], []>, precision = #tpu.contract_precision<fp32>} : vector<8x256xf32>, vector<256x8xf32>, vector<8x8xf32> -> vector<8x8xf32>
    %20 = vector.extract_strided_slice %19 {offsets = [0, 0], sizes = [8, 1], strides = [1, 1]} : vector<8x8xf32> to vector<8x1xf32>
    %cst_9 = arith.constant 3.906250e-03 : f32
    %21 = vector.broadcast %cst_9 : f32 to vector<8x1xf32>
    %22 = arith.mulf %20, %21 : vector<8x1xf32>
    %cst_10 = arith.constant 5.000000e-01 : f32
    %23 = vector.broadcast %cst_10 : f32 to vector<8x1xf32>
    %24 = arith.cmpf olt, %22, %23 : vector<8x1xf32>
    %cst_11 = arith.constant 1.000000e+00 : f32
    %25 = vector.broadcast %cst_11 : f32 to vector<8x256xf32>
    %26 = arith.subf %25, %17 : vector<8x256xf32>
    %27 = vector.shape_cast %24 : vector<8x1xi1> to vector<8x1xi1>
    %28 = vector.broadcast %27 : vector<8x1xi1> to vector<8x256xi1>
    %29 = arith.select %28, %17, %26 : vector<8x256xi1>, vector<8x256xf32>
    %c0_12 = arith.constant 0 : index
    %c0_13 = arith.constant 0 : index
    %30 = vector.load %arg1[%c0_12, %c0_13] : memref<8x1xf32, #tpu.memory_space<vmem>>, vector<8x1xf32>
    %cst_14 = arith.constant 1.000000e+00 : f32
    %31 = vector.broadcast %cst_14 : f32 to vector<8x1xf32>
    %32 = arith.subf %31, %30 : vector<8x1xf32>
    %cst_15 = arith.constant 1.000000e+02 : f32
    %33 = vector.broadcast %cst_15 : f32 to vector<8x1xf32>
    %34 = arith.divf %33, %32 : vector<8x1xf32>
    %cst_16 = arith.constant 0.000000e+00 : f32
    %35 = vector.broadcast %cst_16 : f32 to vector<8x1xf32>
    %36 = arith.select %7, %34, %35 : vector<8x1xi1>, vector<8x1xf32>
    %37 = vector.broadcast %30 : vector<8x1xf32> to vector<8x256xf32>
    %38 = arith.subf %29, %37 : vector<8x256xf32>
    %cst_17 = arith.constant 0.000000e+00 : f32
    %39 = vector.broadcast %cst_17 : f32 to vector<8x256xf32>
    %40 = arith.maximumf %38, %39 : vector<8x256xf32>
    %41 = vector.broadcast %36 : vector<8x1xf32> to vector<8x256xf32>
    %42 = arith.mulf %40, %41 : vector<8x256xf32>
    %cst_18 = arith.constant dense<0.000000e+00> : vector<8x8xf32>
    %43 = tpu.matmul %42, %18, %cst_18 {dimension_numbers = #tpu.dot_dimension_numbers<[1], [0], [0], [1], [0, 0, 1, 1], [], []>, precision = #tpu.contract_precision<fp32>} : vector<8x256xf32>, vector<256x8xf32>, vector<8x8xf32> -> vector<8x8xf32>
    %c0_19 = arith.constant 0 : index
    %c0_20 = arith.constant 0 : index
    %44 = vector.load %arg4[%c0_19, %c0_20] : memref<8x8xf32, #tpu.memory_space<vmem>>, vector<8x8xf32>
    tpu.vector_store %arg4[%c0_19, %c0_20], %43 {strides = array<i32>} : memref<8x8xf32, #tpu.memory_space<vmem>>, vector<8x8xf32>,
    return
  }
  func.func @transform_0(%arg0: i32) -> (i32, i32) {
    %c0_i32 = arith.constant 0 : i32
    %c0_i32_0 = arith.constant 0 : i32
    return %arg0, %c0_i32 : i32, i32
  }
  func.func @transform_1(%arg0: i32) -> (i32, i32) {
    %c0_i32 = arith.constant 0 : i32
    %c0_i32_0 = arith.constant 0 : i32
    return %arg0, %c0_i32 : i32, i32
  }
  func.func @transform_2(%arg0: i32) -> (i32, i32) {
    %c0_i32 = arith.constant 0 : i32
    %c0_i32_0 = arith.constant 0 : i32
    %c0_i32_1 = arith.constant 0 : i32
    return %c0_i32, %c0_i32_0 : i32, i32
  }
  func.func @transform_3(%arg0: i32) -> (i32, i32) {
    %c0_i32 = arith.constant 0 : i32
    %c0_i32_0 = arith.constant 0 : i32
    return %arg0, %c0_i32 : i32, i32
  }
}

</mosaic_0001>

<llo_original>
// kernel: tpu_custom_call.1
$region0: #{tpu_custom_call.1}
  #allocation0 [shape = 'u32[]', space=smem, size = 0x4, offset = 0x4, fixed_abs, tag = 'smem constant byte address 0x4 - core index']
  #allocation1 [shape = 'u32[144,128]{1,0:T(1,128)}', space=vmem, size = 0x12000, scoped, tag = 'internal scratch']
  %s0 = inlined_call_operand.vmem [shape: f32[8,1], index: 0, kind: input, shape index: {}]
  %s1 = inlined_call_operand.vmem [shape: f32[8,256], index: 1, kind: input, shape index: {}]
  %s2 = inlined_call_operand.vmem [shape: f32[256,8], index: 2, kind: input, shape index: {}]
  %s3 = inlined_call_operand.hbm [shape: f32[8,8], index: 3, kind: output, shape index: {}]
  %s4 = sld [smem:[#allocation0]]
  $region22: #{tpu_custom_call.1} parent=0
    _
  %s6 = ssub.s32 1, %s4
  %s7 = scalar_select 0, %s6, %s4
  $region1: #{tpu_custom_call.1} parent=0
    #allocation2 [shape = 'u8[4096]{0}', space=vmem, size = 0x1000, scoped, tag = 'output window, operand 0, single buffered']
    #allocation3 [shape = 's32[1]{0}', space=sflag, size = 0x4, scoped, tag = 'scoped memory for tpu_custom_call.1']
    %8 = vsyncpa [#allocation3], 0
    // Predicated region
    $region2: #{tpu_custom_call.1} parent=1 // pred_check
      _
    $region3: #{tpu_custom_call.1} parent=1 // pred_check_branch
      %10 = sbr.rel (0) target = $region5
    $region4: #{tpu_custom_call.1} parent=1 // pred_region
      _
    $region5: #{tpu_custom_call.1} parent=1 // pred_fallthru
      _
    // Predicated region
    $region6: #{tpu_custom_call.1} parent=1 // pred_check
      _
    $region7: #{tpu_custom_call.1} parent=1 // pred_check_branch
      %12 = sbr.rel (0) target = $region9
    $region8: #{tpu_custom_call.1} parent=1 // pred_region
      _
    $region9: #{tpu_custom_call.1} parent=1 // pred_fallthru
      _
    // Predicated region
    $region10: #{tpu_custom_call.1} parent=1 // pred_check
      _
    $region11: #{tpu_custom_call.1} parent=1 // pred_check_branch
      %14 = sbr.rel (0) target = $region13
    $region12: #{tpu_custom_call.1} parent=1 // pred_region
      _
    $region13: #{tpu_custom_call.1} parent=1 // pred_fallthru
      _
    %v15 = vld [vmem:[%s1] sm:$0xff]
    %v16 = vld [vmem:[%s1 + $0x8] sm:$0xff]
    %v17 = vmin.f32 %v15, %v16
    %18 = vmin.xlane.f32.xlu0 %v17
    %v19 = vpop.xlane.xlu0 %18
    %v20 = vmax.f32 %v15, %v16
    %21 = vmax.xlane.f32.xlu0 %v20
    %v22 = vpop.xlane.xlu0 %21
    %v23 = vsub.f32 %v22, %v19
    %vm24 = vcmp.ne.f32.partialorder %v23, 0.0
    %v25 = vsel %vm24, %v23, 1.0
    %v26 = vrcp.pop %v25
    %v27 = vmul.f32 1.0, %v26
    %v28 = vsel %vm24, %v27, 0.0
    %v29 = vsub.f32 %v15, %v19
    %v30 = vsub.f32 %v16, %v19
    %v31 = vmul.f32 %v29, %v28
    %v32 = vmul.f32 %v30, %v28
    %v33 = vld [vmem:[%s2] sm:$0xff]
    %v34 = vld [vmem:[%s2 + $0x8] sm:$0xff]
    %v35 = vld [vmem:[%s2 + $0x10] sm:$0xff]
    %v36 = vld [vmem:[%s2 + $0x18] sm:$0xff]
    %v37 = vld [vmem:[%s2 + $0x20] sm:$0xff]
    %v38 = vld [vmem:[%s2 + $0x28] sm:$0xff]
    %v39 = vld [vmem:[%s2 + $0x30] sm:$0xff]
    %v40 = vld [vmem:[%s2 + $0x38] sm:$0xff]
    %v41 = vld [vmem:[%s2 + $0x40] sm:$0xff]
    %v42 = vld [vmem:[%s2 + $0x48] sm:$0xff]
    %v43 = vld [vmem:[%s2 + $0x50] sm:$0xff]
    %v44 = vld [vmem:[%s2 + $0x58] sm:$0xff]
    %v45 = vld [vmem:[%s2 + $0x60] sm:$0xff]
    %v46 = vld [vmem:[%s2 + $0x68] sm:$0xff]
    %v47 = vld [vmem:[%s2 + $0x70] sm:$0xff]
    %v48 = vld [vmem:[%s2 + $0x78] sm:$0xff]
    %v49 = vld [vmem:[%s2 + $0x80] sm:$0xff]
    %v50 = vld [vmem:[%s2 + $0x88] sm:$0xff]
    %v51 = vld [vmem:[%s2 + $0x90] sm:$0xff]
    %v52 = vld [vmem:[%s2 + $0x98] sm:$0xff]
    %v53 = vld [vmem:[%s2 + $0xa0] sm:$0xff]
    %v54 = vld [vmem:[%s2 + $0xa8] sm:$0xff]
    %v55 = vld [vmem:[%s2 + $0xb0] sm:$0xff]
    %v56 = vld [vmem:[%s2 + $0xb8] sm:$0xff]
    %v57 = vld [vmem:[%s2 + $0xc0] sm:$0xff]
    %v58 = vld [vmem:[%s2 + $0xc8] sm:$0xff]
    %v59 = vld [vmem:[%s2 + $0xd0] sm:$0xff]
    %v60 = vld [vmem:[%s2 + $0xd8] sm:$0xff]
    %v61 = vld [vmem:[%s2 + $0xe0] sm:$0xff]
    %v62 = vld [vmem:[%s2 + $0xe8] sm:$0xff]
    %v63 = vld [vmem:[%s2 + $0xf0] sm:$0xff]
    %v64 = vld [vmem:[%s2 + $0xf8] sm:$0xff]
    %65 = vmatprep.subr.mxu0 0.0
    %v66 = vand.u32 %v48, 4294901760
    %67 = vmatpush1.msra.mxu0 %v66
    %68 = vmatprep.subr.mxu0 0.0
    %v69 = vand.u32 %v47, 4294901760
    %70 = vmatpush1.msra.mxu0 %v69
    %71 = vmatprep.subr.mxu0 0.0
    %v72 = vand.u32 %v46, 4294901760
    %73 = vmatpush1.msra.mxu0 %v72
    %74 = vmatprep.subr.mxu0 0.0
    %v75 = vand.u32 %v45, 4294901760
    %76 = vmatpush1.msra.mxu0 %v75
    %77 = vmatprep.subr.mxu0 0.0
    %v78 = vand.u32 %v44, 4294901760
    %79 = vmatpush1.msra.mxu0 %v78
    %80 = vmatprep.subr.mxu0 0.0
    %v81 = vand.u32 %v43, 4294901760
    %82 = vmatpush1.msra.mxu0 %v81
    %83 = vmatprep.subr.mxu0 0.0
    %v84 = vand.u32 %v42, 4294901760
    %85 = vmatpush1.msra.mxu0 %v84
    %86 = vmatprep.subr.mxu0 0.0
    %v87 = vand.u32 %v41, 4294901760
    %88 = vmatpush1.msra.mxu0 %v87
    %89 = vmatprep.subr.mxu0 0.0
    %v90 = vand.u32 %v40, 4294901760
    %91 = vmatpush1.msra.mxu0 %v90
    %92 = vmatprep.subr.mxu0 0.0
    %v93 = vand.u32 %v39, 4294901760
    %94 = vmatpush1.msra.mxu0 %v93
    %95 = vmatprep.subr.mxu0 0.0
    %v96 = vand.u32 %v38, 4294901760
    %97 = vmatpush1.msra.mxu0 %v96
    %98 = vmatprep.subr.mxu0 0.0
    %v99 = vand.u32 %v37, 4294901760
    %100 = vmatpush1.msra.mxu0 %v99
    %101 = vmatprep.subr.mxu0 0.0
    %v102 = vand.u32 %v36, 4294901760
    %103 = vmatpush1.msra.mxu0 %v102
    %104 = vmatprep.subr.mxu0 0.0
    %v105 = vand.u32 %v35, 4294901760
    %106 = vmatpush1.msra.mxu0 %v105
    %107 = vmatprep.subr.mxu0 0.0
    %v108 = vand.u32 %v34, 4294901760
    %109 = vmatpush1.msra.mxu0 %v108
    %110 = vmatprep.subr.mxu0 0.0
    %v111 = vand.u32 %v33, 4294901760
    %112 = vmatpush1.msra.mxu0 %v111
    %113 = vmatprep.subr.mxu0 0.0
    %v114 = vand.u32 %v64, 4294901760
    %115 = vmatpush2.msra.mxu0 %v114
    %116 = vmatprep.subr.mxu0 0.0
    %v117 = vand.u32 %v63, 4294901760
    %118 = vmatpush2.msra.mxu0 %v117
    %119 = vmatprep.subr.mxu0 0.0
    %v120 = vand.u32 %v62, 4294901760
    %121 = vmatpush2.msra.mxu0 %v120
    %122 = vmatprep.subr.mxu0 0.0
    %v123 = vand.u32 %v61, 4294901760
    %124 = vmatpush2.msra.mxu0 %v123
    %125 = vmatprep.subr.mxu0 0.0
    %v126 = vand.u32 %v60, 4294901760
    %127 = vmatpush2.msra.mxu0 %v126
    %128 = vmatprep.subr.mxu0 0.0
    %v129 = vand.u32 %v59, 4294901760
    %130 = vmatpush2.msra.mxu0 %v129
    %131 = vmatprep.subr.mxu0 0.0
    %v132 = vand.u32 %v58, 4294901760
    %133 = vmatpush2.msra.mxu0 %v132
    %134 = vmatprep.subr.mxu0 0.0
    %v135 = vand.u32 %v57, 4294901760
    %136 = vmatpush2.msra.mxu0 %v135
    %137 = vmatprep.subr.mxu0 0.0
    %v138 = vand.u32 %v56, 4294901760
    %139 = vmatpush2.msra.mxu0 %v138
    %140 = vmatprep.subr.mxu0 0.0
    %v141 = vand.u32 %v55, 4294901760
    %142 = vmatpush2.msra.mxu0 %v141
    %143 = vmatprep.subr.mxu0 0.0
    %v144 = vand.u32 %v54, 4294901760
    %145 = vmatpush2.msra.mxu0 %v144
    %146 = vmatprep.subr.mxu0 0.0
    %v147 = vand.u32 %v53, 4294901760
    %148 = vmatpush2.msra.mxu0 %v147
    %149 = vmatprep.subr.mxu0 0.0
    %v150 = vand.u32 %v52, 4294901760
    %151 = vmatpush2.msra.mxu0 %v150
    %152 = vmatprep.subr.mxu0 0.0
    %v153 = vand.u32 %v51, 4294901760
    %154 = vmatpush2.msra.mxu0 %v153
    %155 = vmatprep.subr.mxu0 0.0
    %v156 = vand.u32 %v50, 4294901760
    %157 = vmatpush2.msra.mxu0 %v156
    %158 = vmatprep.subr.mxu0 0.0
    %v159 = vand.u32 %v49, 4294901760
    %160 = vmatpush2.msra.mxu0 %v159
    %v161 = vand.u32 %v32, 4294901760
    %v162 = vsub.f32 %v32, %v161
    %v163 = vand.u32 %v162, 4294901760
    %v164 = vsub.f32 %v162, %v163
    %v165 = vand.u32 %v164, 4294901760
    %166 = vmatprep.mubr.f32.mxu0 %v165
    %v167 = vand.u32 %v31, 4294901760
    %v168 = vsub.f32 %v31, %v167
    %v169 = vand.u32 %v168, 4294901760
    %v170 = vsub.f32 %v168, %v169
    %v171 = vand.u32 %v170, 4294901760
    %172 = vmatmul.mubr.f32.gmra.mxu0 %v171
    %v173 = vpop.f32.mrf.mxu0
    %v174 = vadd.f32 0.0, %v173
    %v175 = vpop.f32.mrf.mxu0
    %176 = vdwg.mxu0
    %177 = vmatprep.subr.mxu0 0.0
    %v178 = vand.u32 %v48, 4294901760
    %v179 = vsub.f32 %v48, %v178
    %v180 = vand.u32 %v179, 4294901760
    %v181 = vsub.f32 %v179, %v180
    %v182 = vand.u32 %v181, 4294901760
    %183 = vmatpush1.msra.mxu0 %v182
    %184 = vmatprep.subr.mxu0 0.0
    %v185 = vand.u32 %v47, 4294901760
    %v186 = vsub.f32 %v47, %v185
    %v187 = vand.u32 %v186, 4294901760
    %v188 = vsub.f32 %v186, %v187
    %v189 = vand.u32 %v188, 4294901760
    %190 = vmatpush1.msra.mxu0 %v189
    %191 = vmatprep.subr.mxu0 0.0
    %v192 = vand.u32 %v46, 4294901760
    %v193 = vsub.f32 %v46, %v192
    %v194 = vand.u32 %v193, 4294901760
    %v195 = vsub.f32 %v193, %v194
    %v196 = vand.u32 %v195, 4294901760
    %197 = vmatpush1.msra.mxu0 %v196
    %198 = vmatprep.subr.mxu0 0.0
    %v199 = vand.u32 %v45, 4294901760
    %v200 = vsub.f32 %v45, %v199
    %v201 = vand.u32 %v200, 4294901760
    %v202 = vsub.f32 %v200, %v201
    %v203 = vand.u32 %v202, 4294901760
    %204 = vmatpush1.msra.mxu0 %v203
    %205 = vmatprep.subr.mxu0 0.0
    %v206 = vand.u32 %v44, 4294901760
    %v207 = vsub.f32 %v44, %v206
    %v208 = vand.u32 %v207, 4294901760
    %v209 = vsub.f32 %v207, %v208
    %v210 = vand.u32 %v209, 4294901760
    %211 = vmatpush1.msra.mxu0 %v210
    %212 = vmatprep.subr.mxu0 0.0
    %v213 = vand.u32 %v43, 4294901760
    %v214 = vsub.f32 %v43, %v213
    %v215 = vand.u32 %v214, 4294901760
    %v216 = vsub.f32 %v214, %v215
    %v217 = vand.u32 %v216, 4294901760
    %218 = vmatpush1.msra.mxu0 %v217
    %219 = vmatprep.subr.mxu0 0.0
    %v220 = vand.u32 %v42, 4294901760
    %v221 = vsub.f32 %v42, %v220
    %v222 = vand.u32 %v221, 4294901760
    %v223 = vsub.f32 %v221, %v222
    %v224 = vand.u32 %v223, 4294901760
    %225 = vmatpush1.msra.mxu0 %v224
    %226 = vmatprep.subr.mxu0 0.0
    %v227 = vand.u32 %v41, 4294901760
    %v228 = vsub.f32 %v41, %v227
    %v229 = vand.u32 %v228, 4294901760
    %v230 = vsub.f32 %v228, %v229
    %v231 = vand.u32 %v230, 4294901760
    %232 = vmatpush1.msra.mxu0 %v231
    %233 = vmatprep.subr.mxu0 0.0
    %v234 = vand.u32 %v40, 4294901760
    %v235 = vsub.f32 %v40, %v234
    %v236 = vand.u32 %v235, 4294901760
    %v237 = vsub.f32 %v235, %v236
    %v238 = vand.u32 %v237, 4294901760
    %239 = vmatpush1.msra.mxu0 %v238
    %240 = vmatprep.subr.mxu0 0.0
    %v241 = vand.u32 %v39, 4294901760
    %v242 = vsub.f32 %v39, %v241
    %v243 = vand.u32 %v242, 4294901760
    %v244 = vsub.f32 %v242, %v243
    %v245 = vand.u32 %v244, 4294901760
    %246 = vmatpush1.msra.mxu0 %v245
    %247 = vmatprep.subr.mxu0 0.0
    %v248 = vand.u32 %v38, 4294901760
    %v249 = vsub.f32 %v38, %v248
    %v250 = vand.u32 %v249, 4294901760
    %v251 = vsub.f32 %v249, %v250
    %v252 = vand.u32 %v251, 4294901760
    %253 = vmatpush1.msra.mxu0 %v252
    %254 = vmatprep.subr.mxu0 0.0
    %v255 = vand.u32 %v37, 4294901760
    %v256 = vsub.f32 %v37, %v255
    %v257 = vand.u32 %v256, 4294901760
    %v258 = vsub.f32 %v256, %v257
    %v259 = vand.u32 %v258, 4294901760
    %260 = vmatpush1.msra.mxu0 %v259
    %261 = vmatprep.subr.mxu0 0.0
    %v262 = vand.u32 %v36, 4294901760
    %v263 = vsub.f32 %v36, %v262
    %v264 = vand.u32 %v263, 4294901760
    %v265 = vsub.f32 %v263, %v264
    %v266 = vand.u32 %v265, 4294901760
    %267 = vmatpush1.msra.mxu0 %v266
    %268 = vmatprep.subr.mxu0 0.0
    %v269 = vand.u32 %v35, 4294901760
    %v270 = vsub.f32 %v35, %v269
    %v271 = vand.u32 %v270, 4294901760
    %v272 = vsub.f32 %v270, %v271
    %v273 = vand.u32 %v272, 4294901760
    %274 = vmatpush1.msra.mxu0 %v273
    %275 = vmatprep.subr.mxu0 0.0
    %v276 = vand.u32 %v34, 4294901760
    %v277 = vsub.f32 %v34, %v276
    %v278 = vand.u32 %v277, 4294901760
    %v279 = vsub.f32 %v277, %v278
    %v280 = vand.u32 %v279, 4294901760
    %281 = vmatpush1.msra.mxu0 %v280
    %282 = vmatprep.subr.mxu0 0.0
    %v283 = vand.u32 %v33, 4294901760
    %v284 = vsub.f32 %v33, %v283
    %v285 = vand.u32 %v284, 4294901760
    %v286 = vsub.f32 %v284, %v285
    %v287 = vand.u32 %v286, 4294901760
    %288 = vmatpush1.msra.mxu0 %v287
    %289 = vmatprep.subr.mxu0 0.0
    %v290 = vand.u32 %v64, 4294901760
    %v291 = vsub.f32 %v64, %v290
    %v292 = vand.u32 %v291, 4294901760
    %v293 = vsub.f32 %v291, %v292
    %v294 = vand.u32 %v293, 4294901760
    %295 = vmatpush2.msra.mxu0 %v294
    %296 = vmatprep.subr.mxu0 0.0
    %v297 = vand.u32 %v63, 4294901760
    %v298 = vsub.f32 %v63, %v297
    %v299 = vand.u32 %v298, 4294901760
    %v300 = vsub.f32 %v298, %v299
    %v301 = vand.u32 %v300, 4294901760
    %302 = vmatpush2.msra.mxu0 %v301
    %303 = vmatprep.subr.mxu0 0.0
    %v304 = vand.u32 %v62, 4294901760
    %v305 = vsub.f32 %v62, %v304
    %v306 = vand.u32 %v305, 4294901760
    %v307 = vsub.f32 %v305, %v306
    %v308 = vand.u32 %v307, 4294901760
    %309 = vmatpush2.msra.mxu0 %v308
    %310 = vmatprep.subr.mxu0 0.0
    %v311 = vand.u32 %v61, 4294901760
    %v312 = vsub.f32 %v61, %v311
    %v313 = vand.u32 %v312, 4294901760
    %v314 = vsub.f32 %v312, %v313
    %v315 = vand.u32 %v314, 4294901760
    %316 = vmatpush2.msra.mxu0 %v315
    %317 = vmatprep.subr.mxu0 0.0
    %v318 = vand.u32 %v60, 4294901760
    %v319 = vsub.f32 %v60, %v318
    %v320 = vand.u32 %v319, 4294901760
    %v321 = vsub.f32 %v319, %v320
    %v322 = vand.u32 %v321, 4294901760
    %323 = vmatpush2.msra.mxu0 %v322
    %324 = vmatprep.subr.mxu0 0.0
    %v325 = vand.u32 %v59, 4294901760
    %v326 = vsub.f32 %v59, %v325
    %v327 = vand.u32 %v326, 4294901760
    %v328 = vsub.f32 %v326, %v327
    %v329 = vand.u32 %v328, 4294901760
    %330 = vmatpush2.msra.mxu0 %v329
    %331 = vmatprep.subr.mxu0 0.0
    %v332 = vand.u32 %v58, 4294901760
    %v333 = vsub.f32 %v58, %v332
    %v334 = vand.u32 %v333, 4294901760
    %v335 = vsub.f32 %v333, %v334
    %v336 = vand.u32 %v335, 4294901760
    %337 = vmatpush2.msra.mxu0 %v336
    %338 = vmatprep.subr.mxu0 0.0
    %v339 = vand.u32 %v57, 4294901760
    %v340 = vsub.f32 %v57, %v339
    %v341 = vand.u32 %v340, 4294901760
    %v342 = vsub.f32 %v340, %v341
    %v343 = vand.u32 %v342, 4294901760
    %344 = vmatpush2.msra.mxu0 %v343
    %345 = vmatprep.subr.mxu0 0.0
    %v346 = vand.u32 %v56, 4294901760
    %v347 = vsub.f32 %v56, %v346
    %v348 = vand.u32 %v347, 4294901760
    %v349 = vsub.f32 %v347, %v348
    %v350 = vand.u32 %v349, 4294901760
    %351 = vmatpush2.msra.mxu0 %v350
    %352 = vmatprep.subr.mxu0 0.0
    %v353 = vand.u32 %v55, 4294901760
    %v354 = vsub.f32 %v55, %v353
    %v355 = vand.u32 %v354, 4294901760
    %v356 = vsub.f32 %v354, %v355
    %v357 = vand.u32 %v356, 4294901760
    %358 = vmatpush2.msra.mxu0 %v357
    %359 = vmatprep.subr.mxu0 0.0
    %v360 = vand.u32 %v54, 4294901760
    %v361 = vsub.f32 %v54, %v360
    %v362 = vand.u32 %v361, 4294901760
    %v363 = vsub.f32 %v361, %v362
    %v364 = vand.u32 %v363, 4294901760
    %365 = vmatpush2.msra.mxu0 %v364
    %366 = vmatprep.subr.mxu0 0.0
    %v367 = vand.u32 %v53, 4294901760
    %v368 = vsub.f32 %v53, %v367
    %v369 = vand.u32 %v368, 4294901760
    %v370 = vsub.f32 %v368, %v369
    %v371 = vand.u32 %v370, 4294901760
    %372 = vmatpush2.msra.mxu0 %v371
    %373 = vmatprep.subr.mxu0 0.0
    %v374 = vand.u32 %v52, 4294901760
    %v375 = vsub.f32 %v52, %v374
    %v376 = vand.u32 %v375, 4294901760
    %v377 = vsub.f32 %v375, %v376
    %v378 = vand.u32 %v377, 4294901760
    %379 = vmatpush2.msra.mxu0 %v378
    %380 = vmatprep.subr.mxu0 0.0
    %v381 = vand.u32 %v51, 4294901760
    %v382 = vsub.f32 %v51, %v381
    %v383 = vand.u32 %v382, 4294901760
    %v384 = vsub.f32 %v382, %v383
    %v385 = vand.u32 %v384, 4294901760
    %386 = vmatpush2.msra.mxu0 %v385
    %387 = vmatprep.subr.mxu0 0.0
    %v388 = vand.u32 %v50, 4294901760
    %v389 = vsub.f32 %v50, %v388
    %v390 = vand.u32 %v389, 4294901760
    %v391 = vsub.f32 %v389, %v390
    %v392 = vand.u32 %v391, 4294901760
    %393 = vmatpush2.msra.mxu0 %v392
    %394 = vmatprep.subr.mxu0 0.0
    %v395 = vand.u32 %v49, 4294901760
    %v396 = vsub.f32 %v49, %v395
    %v397 = vand.u32 %v396, 4294901760
    %v398 = vsub.f32 %v396, %v397
    %v399 = vand.u32 %v398, 4294901760
    %400 = vmatpush2.msra.mxu0 %v399
    %v401 = vand.u32 %v32, 4294901760
    %402 = vmatprep.mubr.f32.mxu0 %v401
    %v403 = vand.u32 %v31, 4294901760
    %404 = vmatmul.mubr.f32.gmra.mxu0 %v403
    %v405 = vpop.f32.mrf.mxu0
    %v406 = vadd.f32 %v174, %v405
    %v407 = vpop.f32.mrf.mxu0
    %408 = vdwg.mxu0
    %409 = vmatprep.subr.mxu0 0.0
    %v410 = vand.u32 %v48, 4294901760
    %v411 = vsub.f32 %v48, %v410
    %412 = vmatpush1.msra.mxu0 %v411
    %413 = vmatprep.subr.mxu0 0.0
    %v414 = vand.u32 %v47, 4294901760
    %v415 = vsub.f32 %v47, %v414
    %416 = vmatpush1.msra.mxu0 %v415
    %417 = vmatprep.subr.mxu0 0.0
    %v418 = vand.u32 %v46, 4294901760
    %v419 = vsub.f32 %v46, %v418
    %420 = vmatpush1.msra.mxu0 %v419
    %421 = vmatprep.subr.mxu0 0.0
    %v422 = vand.u32 %v45, 4294901760
    %v423 = vsub.f32 %v45, %v422
    %424 = vmatpush1.msra.mxu0 %v423
    %425 = vmatprep.subr.mxu0 0.0
    %v426 = vand.u32 %v44, 4294901760
    %v427 = vsub.f32 %v44, %v426
    %428 = vmatpush1.msra.mxu0 %v427
    %429 = vmatprep.subr.mxu0 0.0
    %v430 = vand.u32 %v43, 4294901760
    %v431 = vsub.f32 %v43, %v430
    %432 = vmatpush1.msra.mxu0 %v431
    %433 = vmatprep.subr.mxu0 0.0
    %v434 = vand.u32 %v42, 4294901760
    %v435 = vsub.f32 %v42, %v434
    %436 = vmatpush1.msra.mxu0 %v435
    %437 = vmatprep.subr.mxu0 0.0
    %v438 = vand.u32 %v41, 4294901760
    %v439 = vsub.f32 %v41, %v438
    %440 = vmatpush1.msra.mxu0 %v439
    %441 = vmatprep.subr.mxu0 0.0
    %v442 = vand.u32 %v40, 4294901760
    %v443 = vsub.f32 %v40, %v442
    %444 = vmatpush1.msra.mxu0 %v443
    %445 = vmatprep.subr.mxu0 0.0
    %v446 = vand.u32 %v39, 4294901760
    %v447 = vsub.f32 %v39, %v446
    %448 = vmatpush1.msra.mxu0 %v447
    %449 = vmatprep.subr.mxu0 0.0
    %v450 = vand.u32 %v38, 4294901760
    %v451 = vsub.f32 %v38, %v450
    %452 = vmatpush1.msra.mxu0 %v451
    %453 = vmatprep.subr.mxu0 0.0
    %v454 = vand.u32 %v37, 4294901760
    %v455 = vsub.f32 %v37, %v454
    %456 = vmatpush1.msra.mxu0 %v455
    %457 = vmatprep.subr.mxu0 0.0
    %v458 = vand.u32 %v36, 4294901760
    %v459 = vsub.f32 %v36, %v458
    %460 = vmatpush1.msra.mxu0 %v459
    %461 = vmatprep.subr.mxu0 0.0
    %v462 = vand.u32 %v35, 4294901760
    %v463 = vsub.f32 %v35, %v462
    %464 = vmatpush1.msra.mxu0 %v463
    %465 = vmatprep.subr.mxu0 0.0
    %v466 = vand.u32 %v34, 4294901760
    %v467 = vsub.f32 %v34, %v466
    %468 = vmatpush1.msra.mxu0 %v467
    %469 = vmatprep.subr.mxu0 0.0
    %v470 = vand.u32 %v33, 4294901760
    %v471 = vsub.f32 %v33, %v470
    %472 = vmatpush1.msra.mxu0 %v471
    %473 = vmatprep.subr.mxu0 0.0
    %v474 = vand.u32 %v64, 4294901760
    %v475 = vsub.f32 %v64, %v474
    %476 = vmatpush2.msra.mxu0 %v475
    %477 = vmatprep.subr.mxu0 0.0
    %v478 = vand.u32 %v63, 4294901760
    %v479 = vsub.f32 %v63, %v478
    %480 = vmatpush2.msra.mxu0 %v479
    %481 = vmatprep.subr.mxu0 0.0
    %v482 = vand.u32 %v62, 4294901760
    %v483 = vsub.f32 %v62, %v482
    %484 = vmatpush2.msra.mxu0 %v483
    %485 = vmatprep.subr.mxu0 0.0
    %v486 = vand.u32 %v61, 4294901760
    %v487 = vsub.f32 %v61, %v486
    %488 = vmatpush2.msra.mxu0 %v487
    %489 = vmatprep.subr.mxu0 0.0
    %v490 = vand.u32 %v60, 4294901760
    %v491 = vsub.f32 %v60, %v490
    %492 = vmatpush2.msra.mxu0 %v491
    %493 = vmatprep.subr.mxu0 0.0
    %v494 = vand.u32 %v59, 4294901760
    %v495 = vsub.f32 %v59, %v494
    %496 = vmatpush2.msra.mxu0 %v495
    %497 = vmatprep.subr.mxu0 0.0
    %v498 = vand.u32 %v58, 4294901760
    %v499 = vsub.f32 %v58, %v498
    %500 = vmatpush2.msra.mxu0 %v499
    %501 = vmatprep.subr.mxu0 0.0
    %v502 = vand.u32 %v57, 4294901760
    %v503 = vsub.f32 %v57, %v502
    %504 = vmatpush2.msra.mxu0 %v503
    %505 = vmatprep.subr.mxu0 0.0
    %v506 = vand.u32 %v56, 4294901760
    %v507 = vsub.f32 %v56, %v506
    %508 = vmatpush2.msra.mxu0 %v507
    %509 = vmatprep.subr.mxu0 0.0
    %v510 = vand.u32 %v55, 4294901760
    %v511 = vsub.f32 %v55, %v510
    %512 = vmatpush2.msra.mxu0 %v511
    %513 = vmatprep.subr.mxu0 0.0
    %v514 = vand.u32 %v54, 4294901760
    %v515 = vsub.f32 %v54, %v514
    %516 = vmatpush2.msra.mxu0 %v515
    %517 = vmatprep.subr.mxu0 0.0
    %v518 = vand.u32 %v53, 4294901760
    %v519 = vsub.f32 %v53, %v518
    %520 = vmatpush2.msra.mxu0 %v519
    %521 = vmatprep.subr.mxu0 0.0
    %v522 = vand.u32 %v52, 4294901760
    %v523 = vsub.f32 %v52, %v522
    %524 = vmatpush2.msra.mxu0 %v523
    %525 = vmatprep.subr.mxu0 0.0
    %v526 = vand.u32 %v51, 4294901760
    %v527 = vsub.f32 %v51, %v526
    %528 = vmatpush2.msra.mxu0 %v527
    %529 = vmatprep.subr.mxu0 0.0
    %v530 = vand.u32 %v50, 4294901760
    %v531 = vsub.f32 %v50, %v530
    %532 = vmatpush2.msra.mxu0 %v531
    %533 = vmatprep.subr.mxu0 0.0
    %v534 = vand.u32 %v49, 4294901760
    %v535 = vsub.f32 %v49, %v534
    %536 = vmatpush2.msra.mxu0 %v535
    %v537 = vand.u32 %v32, 4294901760
    %v538 = vsub.f32 %v32, %v537
    %539 = vmatprep.mubr.f32.mxu0 %v538
    %v540 = vand.u32 %v31, 4294901760
    %v541 = vsub.f32 %v31, %v540
    %542 = vmatmul.mubr.f32.gmra.mxu0 %v541
    %v543 = vpop.f32.mrf.mxu0
    %v544 = vadd.f32 %v406, %v543
    %v545 = vpop.f32.mrf.mxu0
    %546 = vdwg.mxu0
    %547 = vmatprep.subr.mxu0 0.0
    %v548 = vand.u32 %v48, 4294901760
    %549 = vmatpush1.msra.mxu0 %v548
    %550 = vmatprep.subr.mxu0 0.0
    %v551 = vand.u32 %v47, 4294901760
    %552 = vmatpush1.msra.mxu0 %v551
    %553 = vmatprep.subr.mxu0 0.0
    %v554 = vand.u32 %v46, 4294901760
    %555 = vmatpush1.msra.mxu0 %v554
    %556 = vmatprep.subr.mxu0 0.0
    %v557 = vand.u32 %v45, 4294901760
    %558 = vmatpush1.msra.mxu0 %v557
    %559 = vmatprep.subr.mxu0 0.0
    %v560 = vand.u32 %v44, 4294901760
    %561 = vmatpush1.msra.mxu0 %v560
    %562 = vmatprep.subr.mxu0 0.0
    %v563 = vand.u32 %v43, 4294901760
    %564 = vmatpush1.msra.mxu0 %v563
    %565 = vmatprep.subr.mxu0 0.0
    %v566 = vand.u32 %v42, 4294901760
    %567 = vmatpush1.msra.mxu0 %v566
    %568 = vmatprep.subr.mxu0 0.0
    %v569 = vand.u32 %v41, 4294901760
    %570 = vmatpush1.msra.mxu0 %v569
    %571 = vmatprep.subr.mxu0 0.0
    %v572 = vand.u32 %v40, 4294901760
    %573 = vmatpush1.msra.mxu0 %v572
    %574 = vmatprep.subr.mxu0 0.0
    %v575 = vand.u32 %v39, 4294901760
    %576 = vmatpush1.msra.mxu0 %v575
    %577 = vmatprep.subr.mxu0 0.0
    %v578 = vand.u32 %v38, 4294901760
    %579 = vmatpush1.msra.mxu0 %v578
    %580 = vmatprep.subr.mxu0 0.0
    %v581 = vand.u32 %v37, 4294901760
    %582 = vmatpush1.msra.mxu0 %v581
    %583 = vmatprep.subr.mxu0 0.0
    %v584 = vand.u32 %v36, 4294901760
    %585 = vmatpush1.msra.mxu0 %v584
    %586 = vmatprep.subr.mxu0 0.0
    %v587 = vand.u32 %v35, 4294901760
    %588 = vmatpush1.msra.mxu0 %v587
    %589 = vmatprep.subr.mxu0 0.0
    %v590 = vand.u32 %v34, 4294901760
    %591 = vmatpush1.msra.mxu0 %v590
    %592 = vmatprep.subr.mxu0 0.0
    %v593 = vand.u32 %v33, 4294901760
    %594 = vmatpush1.msra.mxu0 %v593
    %595 = vmatprep.subr.mxu0 0.0
    %v596 = vand.u32 %v64, 4294901760
    %597 = vmatpush2.msra.mxu0 %v596
    %598 = vmatprep.subr.mxu0 0.0
    %v599 = vand.u32 %v63, 4294901760
    %600 = vmatpush2.msra.mxu0 %v599
    %601 = vmatprep.subr.mxu0 0.0
    %v602 = vand.u32 %v62, 4294901760
    %603 = vmatpush2.msra.mxu0 %v602
    %604 = vmatprep.subr.mxu0 0.0
    %v605 = vand.u32 %v61, 4294901760
    %606 = vmatpush2.msra.mxu0 %v605
    %607 = vmatprep.subr.mxu0 0.0
    %v608 = vand.u32 %v60, 4294901760
    %609 = vmatpush2.msra.mxu0 %v608
    %610 = vmatprep.subr.mxu0 0.0
    %v611 = vand.u32 %v59, 4294901760
    %612 = vmatpush2.msra.mxu0 %v611
    %613 = vmatprep.subr.mxu0 0.0
    %v614 = vand.u32 %v58, 4294901760
    %615 = vmatpush2.msra.mxu0 %v614
    %616 = vmatprep.subr.mxu0 0.0
    %v617 = vand.u32 %v57, 4294901760
    %618 = vmatpush2.msra.mxu0 %v617
    %619 = vmatprep.subr.mxu0 0.0
    %v620 = vand.u32 %v56, 4294901760
    %621 = vmatpush2.msra.mxu0 %v620
    %622 = vmatprep.subr.mxu0 0.0
    %v623 = vand.u32 %v55, 4294901760
    %624 = vmatpush2.msra.mxu0 %v623
    %625 = vmatprep.subr.mxu0 0.0
    %v626 = vand.u32 %v54, 4294901760
    %627 = vmatpush2.msra.mxu0 %v626
    %628 = vmatprep.subr.mxu0 0.0
    %v629 = vand.u32 %v53, 4294901760
    %630 = vmatpush2.msra.mxu0 %v629
    %631 = vmatprep.subr.mxu0 0.0
    %v632 = vand.u32 %v52, 4294901760
    %633 = vmatpush2.msra.mxu0 %v632
    %634 = vmatprep.subr.mxu0 0.0
    %v635 = vand.u32 %v51, 4294901760
    %636 = vmatpush2.msra.mxu0 %v635
    %637 = vmatprep.subr.mxu0 0.0
    %v638 = vand.u32 %v50, 4294901760
    %639 = vmatpush2.msra.mxu0 %v638
    %640 = vmatprep.subr.mxu0 0.0
    %v641 = vand.u32 %v49, 4294901760
    %642 = vmatpush2.msra.mxu0 %v641
    %v643 = vand.u32 %v32, 4294901760
    %v644 = vsub.f32 %v32, %v643
    %v645 = vand.u32 %v644, 4294901760
    %646 = vmatprep.mubr.f32.mxu0 %v645
    %v647 = vand.u32 %v31, 4294901760
    %v648 = vsub.f32 %v31, %v647
    %v649 = vand.u32 %v648, 4294901760
    %650 = vmatmul.mubr.f32.gmra.mxu0 %v649
    %v651 = vpop.f32.mrf.mxu0
    %v652 = vadd.f32 %v544, %v651
    %v653 = vpop.f32.mrf.mxu0
    %654 = vdwg.mxu0
    %655 = vmatprep.subr.mxu0 0.0
    %v656 = vand.u32 %v48, 4294901760
    %v657 = vsub.f32 %v48, %v656
    %v658 = vand.u32 %v657, 4294901760
    %659 = vmatpush1.msra.mxu0 %v658
    %660 = vmatprep.subr.mxu0 0.0
    %v661 = vand.u32 %v47, 4294901760
    %v662 = vsub.f32 %v47, %v661
    %v663 = vand.u32 %v662, 4294901760
    %664 = vmatpush1.msra.mxu0 %v663
    %665 = vmatprep.subr.mxu0 0.0
    %v666 = vand.u32 %v46, 4294901760
    %v667 = vsub.f32 %v46, %v666
    %v668 = vand.u32 %v667, 4294901760
    %669 = vmatpush1.msra.mxu0 %v668
    %670 = vmatprep.subr.mxu0 0.0
    %v671 = vand.u32 %v45, 4294901760
    %v672 = vsub.f32 %v45, %v671
    %v673 = vand.u32 %v672, 4294901760
    %674 = vmatpush1.msra.mxu0 %v673
    %675 = vmatprep.subr.mxu0 0.0
    %v676 = vand.u32 %v44, 4294901760
    %v677 = vsub.f32 %v44, %v676
    %v678 = vand.u32 %v677, 4294901760
    %679 = vmatpush1.msra.mxu0 %v678
    %680 = vmatprep.subr.mxu0 0.0
    %v681 = vand.u32 %v43, 4294901760
    %v682 = vsub.f32 %v43, %v681
    %v683 = vand.u32 %v682, 4294901760
    %684 = vmatpush1.msra.mxu0 %v683
    %685 = vmatprep.subr.mxu0 0.0
    %v686 = vand.u32 %v42, 4294901760
    %v687 = vsub.f32 %v42, %v686
    %v688 = vand.u32 %v687, 4294901760
    %689 = vmatpush1.msra.mxu0 %v688
    %690 = vmatprep.subr.mxu0 0.0
    %v691 = vand.u32 %v41, 4294901760
    %v692 = vsub.f32 %v41, %v691
    %v693 = vand.u32 %v692, 4294901760
    %694 = vmatpush1.msra.mxu0 %v693
    %695 = vmatprep.subr.mxu0 0.0
    %v696 = vand.u32 %v40, 4294901760
    %v697 = vsub.f32 %v40, %v696
    %v698 = vand.u32 %v697, 4294901760
    %699 = vmatpush1.msra.mxu0 %v698
    %700 = vmatprep.subr.mxu0 0.0
    %v701 = vand.u32 %v39, 4294901760
    %v702 = vsub.f32 %v39, %v701
    %v703 = vand.u32 %v702, 4294901760
    %704 = vmatpush1.msra.mxu0 %v703
    %705 = vmatprep.subr.mxu0 0.0
    %v706 = vand.u32 %v38, 4294901760
    %v707 = vsub.f32 %v38, %v706
    %v708 = vand.u32 %v707, 4294901760
    %709 = vmatpush1.msra.mxu0 %v708
    %710 = vmatprep.subr.mxu0 0.0
    %v711 = vand.u32 %v37, 4294901760
    %v712 = vsub.f32 %v37, %v711
    %v713 = vand.u32 %v712, 4294901760
    %714 = vmatpush1.msra.mxu0 %v713
    %715 = vmatprep.subr.mxu0 0.0
    %v716 = vand.u32 %v36, 4294901760
    %v717 = vsub.f32 %v36, %v716
    %v718 = vand.u32 %v717, 4294901760
    %719 = vmatpush1.msra.mxu0 %v718
    %720 = vmatprep.subr.mxu0 0.0
    %v721 = vand.u32 %v35, 4294901760
    %v722 = vsub.f32 %v35, %v721
    %v723 = vand.u32 %v722, 4294901760
    %724 = vmatpush1.msra.mxu0 %v723
    %725 = vmatprep.subr.mxu0 0.0
    %v726 = vand.u32 %v34, 4294901760
    %v727 = vsub.f32 %v34, %v726
    %v728 = vand.u32 %v727, 4294901760
    %729 = vmatpush1.msra.mxu0 %v728
    %730 = vmatprep.subr.mxu0 0.0
    %v731 = vand.u32 %v33, 4294901760
    %v732 = vsub.f32 %v33, %v731
    %v733 = vand.u32 %v732, 4294901760
    %734 = vmatpush1.msra.mxu0 %v733
    %735 = vmatprep.subr.mxu0 0.0
    %v736 = vand.u32 %v64, 4294901760
    %v737 = vsub.f32 %v64, %v736
    %v738 = vand.u32 %v737, 4294901760
    %739 = vmatpush2.msra.mxu0 %v738
    %740 = vmatprep.subr.mxu0 0.0
    %v741 = vand.u32 %v63, 4294901760
    %v742 = vsub.f32 %v63, %v741
    %v743 = vand.u32 %v742, 4294901760
    %744 = vmatpush2.msra.mxu0 %v743
    %745 = vmatprep.subr.mxu0 0.0
    %v746 = vand.u32 %v62, 4294901760
    %v747 = vsub.f32 %v62, %v746
    %v748 = vand.u32 %v747, 4294901760
    %749 = vmatpush2.msra.mxu0 %v748
    %750 = vmatprep.subr.mxu0 0.0
    %v751 = vand.u32 %v61, 4294901760
    %v752 = vsub.f32 %v61, %v751
    %v753 = vand.u32 %v752, 4294901760
    %754 = vmatpush2.msra.mxu0 %v753
    %755 = vmatprep.subr.mxu0 0.0
    %v756 = vand.u32 %v60, 4294901760
    %v757 = vsub.f32 %v60, %v756
    %v758 = vand.u32 %v757, 4294901760
    %759 = vmatpush2.msra.mxu0 %v758
    %760 = vmatprep.subr.mxu0 0.0
    %v761 = vand.u32 %v59, 4294901760
    %v762 = vsub.f32 %v59, %v761
    %v763 = vand.u32 %v762, 4294901760
    %764 = vmatpush2.msra.mxu0 %v763
    %765 = vmatprep.subr.mxu0 0.0
    %v766 = vand.u32 %v58, 4294901760
    %v767 = vsub.f32 %v58, %v766
    %v768 = vand.u32 %v767, 4294901760
    %769 = vmatpush2.msra.mxu0 %v768
    %770 = vmatprep.subr.mxu0 0.0
    %v771 = vand.u32 %v57, 4294901760
    %v772 = vsub.f32 %v57, %v771
    %v773 = vand.u32 %v772, 4294901760
    %774 = vmatpush2.msra.mxu0 %v773
    %775 = vmatprep.subr.mxu0 0.0
    %v776 = vand.u32 %v56, 4294901760
    %v777 = vsub.f32 %v56, %v776
    %v778 = vand.u32 %v777, 4294901760
    %779 = vmatpush2.msra.mxu0 %v778
    %780 = vmatprep.subr.mxu0 0.0
    %v781 = vand.u32 %v55, 4294901760
    %v782 = vsub.f32 %v55, %v781
    %v783 = vand.u32 %v782, 4294901760
    %784 = vmatpush2.msra.mxu0 %v783
    %785 = vmatprep.subr.mxu0 0.0
    %v786 = vand.u32 %v54, 4294901760
    %v787 = vsub.f32 %v54, %v786
    %v788 = vand.u32 %v787, 4294901760
    %789 = vmatpush2.msra.mxu0 %v788
    %790 = vmatprep.subr.mxu0 0.0
    %v791 = vand.u32 %v53, 4294901760
    %v792 = vsub.f32 %v53, %v791
    %v793 = vand.u32 %v792, 4294901760
    %794 = vmatpush2.msra.mxu0 %v793
    %795 = vmatprep.subr.mxu0 0.0
    %v796 = vand.u32 %v52, 4294901760
    %v797 = vsub.f32 %v52, %v796
    %v798 = vand.u32 %v797, 4294901760
    %799 = vmatpush2.msra.mxu0 %v798
    %800 = vmatprep.subr.mxu0 0.0
    %v801 = vand.u32 %v51, 4294901760
    %v802 = vsub.f32 %v51, %v801
    %v803 = vand.u32 %v802, 4294901760
    %804 = vmatpush2.msra.mxu0 %v803
    %805 = vmatprep.subr.mxu0 0.0
    %v806 = vand.u32 %v50, 4294901760
    %v807 = vsub.f32 %v50, %v806
    %v808 = vand.u32 %v807, 4294901760
    %809 = vmatpush2.msra.mxu0 %v808
    %810 = vmatprep.subr.mxu0 0.0
    %v811 = vand.u32 %v49, 4294901760
    %v812 = vsub.f32 %v49, %v811
    %v813 = vand.u32 %v812, 4294901760
    %814 = vmatpush2.msra.mxu0 %v813
    %v815 = vand.u32 %v32, 4294901760
    %816 = vmatprep.mubr.f32.mxu0 %v815
    %v817 = vand.u32 %v31, 4294901760
    %818 = vmatmul.mubr.f32.gmra.mxu0 %v817
    %v819 = vpop.f32.mrf.mxu0
    %v820 = vadd.f32 %v652, %v819
    %v821 = vpop.f32.mrf.mxu0
    %822 = vdwg.mxu0
    %823 = vmatprep.subr.mxu0 0.0
    %v824 = vand.u32 %v48, 4294901760
    %825 = vmatpush1.msra.mxu0 %v824
    %826 = vmatprep.subr.mxu0 0.0
    %v827 = vand.u32 %v47, 4294901760
    %828 = vmatpush1.msra.mxu0 %v827
    %829 = vmatprep.subr.mxu0 0.0
    %v830 = vand.u32 %v46, 4294901760
    %831 = vmatpush1.msra.mxu0 %v830
    %832 = vmatprep.subr.mxu0 0.0
    %v833 = vand.u32 %v45, 4294901760
    %834 = vmatpush1.msra.mxu0 %v833
    %835 = vmatprep.subr.mxu0 0.0
    %v836 = vand.u32 %v44, 4294901760
    %837 = vmatpush1.msra.mxu0 %v836
    %838 = vmatprep.subr.mxu0 0.0
    %v839 = vand.u32 %v43, 4294901760
    %840 = vmatpush1.msra.mxu0 %v839
    %841 = vmatprep.subr.mxu0 0.0
    %v842 = vand.u32 %v42, 4294901760
    %843 = vmatpush1.msra.mxu0 %v842
    %844 = vmatprep.subr.mxu0 0.0
    %v845 = vand.u32 %v41, 4294901760
    %846 = vmatpush1.msra.mxu0 %v845
    %847 = vmatprep.subr.mxu0 0.0
    %v848 = vand.u32 %v40, 4294901760
    %849 = vmatpush1.msra.mxu0 %v848
    %850 = vmatprep.subr.mxu0 0.0
    %v851 = vand.u32 %v39, 4294901760
    %852 = vmatpush1.msra.mxu0 %v851
    %853 = vmatprep.subr.mxu0 0.0
    %v854 = vand.u32 %v38, 4294901760
    %855 = vmatpush1.msra.mxu0 %v854
    %856 = vmatprep.subr.mxu0 0.0
    %v857 = vand.u32 %v37, 4294901760
    %858 = vmatpush1.msra.mxu0 %v857
    %859 = vmatprep.subr.mxu0 0.0
    %v860 = vand.u32 %v36, 4294901760
    %861 = vmatpush1.msra.mxu0 %v860
    %862 = vmatprep.subr.mxu0 0.0
    %v863 = vand.u32 %v35, 4294901760
    %864 = vmatpush1.msra.mxu0 %v863
    %865 = vmatprep.subr.mxu0 0.0
    %v866 = vand.u32 %v34, 4294901760
    %867 = vmatpush1.msra.mxu0 %v866
    %868 = vmatprep.subr.mxu0 0.0
    %v869 = vand.u32 %v33, 4294901760
    %870 = vmatpush1.msra.mxu0 %v869
    %871 = vmatprep.subr.mxu0 0.0
    %v872 = vand.u32 %v64, 4294901760
    %873 = vmatpush2.msra.mxu0 %v872
    %874 = vmatprep.subr.mxu0 0.0
    %v875 = vand.u32 %v63, 4294901760
    %876 = vmatpush2.msra.mxu0 %v875
    %877 = vmatprep.subr.mxu0 0.0
    %v878 = vand.u32 %v62, 4294901760
    %879 = vmatpush2.msra.mxu0 %v878
    %880 = vmatprep.subr.mxu0 0.0
    %v881 = vand.u32 %v61, 4294901760
    %882 = vmatpush2.msra.mxu0 %v881
    %883 = vmatprep.subr.mxu0 0.0
    %v884 = vand.u32 %v60, 4294901760
    %885 = vmatpush2.msra.mxu0 %v884
    %886 = vmatprep.subr.mxu0 0.0
    %v887 = vand.u32 %v59, 4294901760
    %888 = vmatpush2.msra.mxu0 %v887
    %889 = vmatprep.subr.mxu0 0.0
    %v890 = vand.u32 %v58, 4294901760
    %891 = vmatpush2.msra.mxu0 %v890
    %892 = vmatprep.subr.mxu0 0.0
    %v893 = vand.u32 %v57, 4294901760
    %894 = vmatpush2.msra.mxu0 %v893
    %895 = vmatprep.subr.mxu0 0.0
    %v896 = vand.u32 %v56, 4294901760
    %897 = vmatpush2.msra.mxu0 %v896
    %898 = vmatprep.subr.mxu0 0.0
    %v899 = vand.u32 %v55, 4294901760
    %900 = vmatpush2.msra.mxu0 %v899
    %901 = vmatprep.subr.mxu0 0.0
    %v902 = vand.u32 %v54, 4294901760
    %903 = vmatpush2.msra.mxu0 %v902
    %904 = vmatprep.subr.mxu0 0.0
    %v905 = vand.u32 %v53, 4294901760
    %906 = vmatpush2.msra.mxu0 %v905
    %907 = vmatprep.subr.mxu0 0.0
    %v908 = vand.u32 %v52, 4294901760
    %909 = vmatpush2.msra.mxu0 %v908
    %910 = vmatprep.subr.mxu0 0.0
    %v911 = vand.u32 %v51, 4294901760
    %912 = vmatpush2.msra.mxu0 %v911
    %913 = vmatprep.subr.mxu0 0.0
    %v914 = vand.u32 %v50, 4294901760
    %915 = vmatpush2.msra.mxu0 %v914
    %916 = vmatprep.subr.mxu0 0.0
    %v917 = vand.u32 %v49, 4294901760
    %918 = vmatpush2.msra.mxu0 %v917
    %v919 = vand.u32 %v32, 4294901760
    %920 = vmatprep.mubr.f32.mxu0 %v919
    %v921 = vand.u32 %v31, 4294901760
    %922 = vmatmul.mubr.f32.gmra.mxu0 %v921
    %v923 = vpop.f32.mrf.mxu0
    %v924 = vadd.f32 %v820, %v923
    %v925 = vpop.f32.mrf.mxu0
    %926 = vdwg.mxu0
    %v927 = vmul.f32 %v924, 0.00390625
    %vm928 = vcmp.lt.f32.partialorder %v927, 0.5
    %v929 = vsub.f32 1.0, %v31
    %v930 = vsub.f32 1.0, %v32
    %v931 = vsel %vm928, 1, 0
    %932 = vset.pattern.permute.xlu0 0
    %933 = vperm.xlu0 %932, %v931
    %v934 = vpop.permute.xlu0 %933
    %vm935 = vcmp.eq.s32.totalorder %v934, 1
    %v936 = vsel %vm935, %v31, %v929
    %v937 = vsel %vm935, %v32, %v930
    %v938 = vld [vmem:[%s0] sm:$0xff]
    %v939 = vsub.f32 1.0, %v938
    %v940 = vrcp.pop %v939
    %v941 = vmul.f32 100.0, %v940
    %v942 = vsel %vm24, %v941, 0.0
    %944 = vset.pattern.permute.xlu0 0
    %945 = vperm.xlu0 %944, %v938
    %v946 = vpop.permute.xlu0 %945
    %v948 = vsub.f32 %v936, %v946
    %v949 = vsub.f32 %v937, %v946
    %v950 = vmax.f32 %v948, 0.0
    %v951 = vmax.f32 %v949, 0.0
    %953 = vset.pattern.permute.xlu0 0
    %954 = vperm.xlu0 %953, %v942
    %v955 = vpop.permute.xlu0 %954
    %v957 = vmul.f32 %v950, %v955
    %v958 = vmul.f32 %v951, %v955
    %959 = vmatprep.subr.mxu0 0.0
    %v960 = vand.u32 %v48, 4294901760
    %961 = vmatpush1.msra.mxu0 %v960
    %962 = vmatprep.subr.mxu0 0.0
    %v963 = vand.u32 %v47, 4294901760
    %964 = vmatpush1.msra.mxu0 %v963
    %965 = vmatprep.subr.mxu0 0.0
    %v966 = vand.u32 %v46, 4294901760
    %967 = vmatpush1.msra.mxu0 %v966
    %968 = vmatprep.subr.mxu0 0.0
    %v969 = vand.u32 %v45, 4294901760
    %970 = vmatpush1.msra.mxu0 %v969
    %971 = vmatprep.subr.mxu0 0.0
    %v972 = vand.u32 %v44, 4294901760
    %973 = vmatpush1.msra.mxu0 %v972
    %974 = vmatprep.subr.mxu0 0.0
    %v975 = vand.u32 %v43, 4294901760
    %976 = vmatpush1.msra.mxu0 %v975
    %977 = vmatprep.subr.mxu0 0.0
    %v978 = vand.u32 %v42, 4294901760
    %979 = vmatpush1.msra.mxu0 %v978
    %980 = vmatprep.subr.mxu0 0.0
    %v981 = vand.u32 %v41, 4294901760
    %982 = vmatpush1.msra.mxu0 %v981
    %983 = vmatprep.subr.mxu0 0.0
    %v984 = vand.u32 %v40, 4294901760
    %985 = vmatpush1.msra.mxu0 %v984
    %986 = vmatprep.subr.mxu0 0.0
    %v987 = vand.u32 %v39, 4294901760
    %988 = vmatpush1.msra.mxu0 %v987
    %989 = vmatprep.subr.mxu0 0.0
    %v990 = vand.u32 %v38, 4294901760
    %991 = vmatpush1.msra.mxu0 %v990
    %992 = vmatprep.subr.mxu0 0.0
    %v993 = vand.u32 %v37, 4294901760
    %994 = vmatpush1.msra.mxu0 %v993
    %995 = vmatprep.subr.mxu0 0.0
    %v996 = vand.u32 %v36, 4294901760
    %997 = vmatpush1.msra.mxu0 %v996
    %998 = vmatprep.subr.mxu0 0.0
    %v999 = vand.u32 %v35, 4294901760
    %1000 = vmatpush1.msra.mxu0 %v999
    %1001 = vmatprep.subr.mxu0 0.0
    %v1002 = vand.u32 %v34, 4294901760
    %1003 = vmatpush1.msra.mxu0 %v1002
    %1004 = vmatprep.subr.mxu0 0.0
    %v1005 = vand.u32 %v33, 4294901760
    %1006 = vmatpush1.msra.mxu0 %v1005
    %1007 = vmatprep.subr.mxu0 0.0
    %v1008 = vand.u32 %v64, 4294901760
    %1009 = vmatpush2.msra.mxu0 %v1008
    %1010 = vmatprep.subr.mxu0 0.0
    %v1011 = vand.u32 %v63, 4294901760
    %1012 = vmatpush2.msra.mxu0 %v1011
    %1013 = vmatprep.subr.mxu0 0.0
    %v1014 = vand.u32 %v62, 4294901760
    %1015 = vmatpush2.msra.mxu0 %v1014
    %1016 = vmatprep.subr.mxu0 0.0
    %v1017 = vand.u32 %v61, 4294901760
    %1018 = vmatpush2.msra.mxu0 %v1017
    %1019 = vmatprep.subr.mxu0 0.0
    %v1020 = vand.u32 %v60, 4294901760
    %1021 = vmatpush2.msra.mxu0 %v1020
    %1022 = vmatprep.subr.mxu0 0.0
    %v1023 = vand.u32 %v59, 4294901760
    %1024 = vmatpush2.msra.mxu0 %v1023
    %1025 = vmatprep.subr.mxu0 0.0
    %v1026 = vand.u32 %v58, 4294901760
    %1027 = vmatpush2.msra.mxu0 %v1026
    %1028 = vmatprep.subr.mxu0 0.0
    %v1029 = vand.u32 %v57, 4294901760
    %1030 = vmatpush2.msra.mxu0 %v1029
    %1031 = vmatprep.subr.mxu0 0.0
    %v1032 = vand.u32 %v56, 4294901760
    %1033 = vmatpush2.msra.mxu0 %v1032
    %1034 = vmatprep.subr.mxu0 0.0
    %v1035 = vand.u32 %v55, 4294901760
    %1036 = vmatpush2.msra.mxu0 %v1035
    %1037 = vmatprep.subr.mxu0 0.0
    %v1038 = vand.u32 %v54, 4294901760
    %1039 = vmatpush2.msra.mxu0 %v1038
    %1040 = vmatprep.subr.mxu0 0.0
    %v1041 = vand.u32 %v53, 4294901760
    %1042 = vmatpush2.msra.mxu0 %v1041
    %1043 = vmatprep.subr.mxu0 0.0
    %v1044 = vand.u32 %v52, 4294901760
    %1045 = vmatpush2.msra.mxu0 %v1044
    %1046 = vmatprep.subr.mxu0 0.0
    %v1047 = vand.u32 %v51, 4294901760
    %1048 = vmatpush2.msra.mxu0 %v1047
    %1049 = vmatprep.subr.mxu0 0.0
    %v1050 = vand.u32 %v50, 4294901760
    %1051 = vmatpush2.msra.mxu0 %v1050
    %1052 = vmatprep.subr.mxu0 0.0
    %v1053 = vand.u32 %v49, 4294901760
    %1054 = vmatpush2.msra.mxu0 %v1053
    %v1055 = vand.u32 %v958, 4294901760
    %v1056 = vsub.f32 %v958, %v1055
    %v1057 = vand.u32 %v1056, 4294901760
    %v1058 = vsub.f32 %v1056, %v1057
    %v1059 = vand.u32 %v1058, 4294901760
    %1060 = vmatprep.mubr.f32.mxu0 %v1059
    %v1061 = vand.u32 %v957, 4294901760
    %v1062 = vsub.f32 %v957, %v1061
    %v1063 = vand.u32 %v1062, 4294901760
    %v1064 = vsub.f32 %v1062, %v1063
    %v1065 = vand.u32 %v1064, 4294901760
    %1066 = vmatmul.mubr.f32.gmra.mxu0 %v1065
    %v1067 = vpop.f32.mrf.mxu0
    %v1068 = vadd.f32 0.0, %v1067
    %v1069 = vpop.f32.mrf.mxu0
    %1070 = vdwg.mxu0
    %1071 = vmatprep.subr.mxu0 0.0
    %v1072 = vand.u32 %v48, 4294901760
    %v1073 = vsub.f32 %v48, %v1072
    %v1074 = vand.u32 %v1073, 4294901760
    %v1075 = vsub.f32 %v1073, %v1074
    %v1076 = vand.u32 %v1075, 4294901760
    %1077 = vmatpush1.msra.mxu0 %v1076
    %1078 = vmatprep.subr.mxu0 0.0
    %v1079 = vand.u32 %v47, 4294901760
    %v1080 = vsub.f32 %v47, %v1079
    %v1081 = vand.u32 %v1080, 4294901760
    %v1082 = vsub.f32 %v1080, %v1081
    %v1083 = vand.u32 %v1082, 4294901760
    %1084 = vmatpush1.msra.mxu0 %v1083
    %1085 = vmatprep.subr.mxu0 0.0
    %v1086 = vand.u32 %v46, 4294901760
    %v1087 = vsub.f32 %v46, %v1086
    %v1088 = vand.u32 %v1087, 4294901760
    %v1089 = vsub.f32 %v1087, %v1088
    %v1090 = vand.u32 %v1089, 4294901760
    %1091 = vmatpush1.msra.mxu0 %v1090
    %1092 = vmatprep.subr.mxu0 0.0
    %v1093 = vand.u32 %v45, 4294901760
    %v1094 = vsub.f32 %v45, %v1093
    %v1095 = vand.u32 %v1094, 4294901760
    %v1096 = vsub.f32 %v1094, %v1095
    %v1097 = vand.u32 %v1096, 4294901760
    %1098 = vmatpush1.msra.mxu0 %v1097
    %1099 = vmatprep.subr.mxu0 0.0
    %v1100 = vand.u32 %v44, 4294901760
    %v1101 = vsub.f32 %v44, %v1100
    %v1102 = vand.u32 %v1101, 4294901760
    %v1103 = vsub.f32 %v1101, %v1102
    %v1104 = vand.u32 %v1103, 4294901760
    %1105 = vmatpush1.msra.mxu0 %v1104
    %1106 = vmatprep.subr.mxu0 0.0
    %v1107 = vand.u32 %v43, 4294901760
    %v1108 = vsub.f32 %v43, %v1107
    %v1109 = vand.u32 %v1108, 4294901760
    %v1110 = vsub.f32 %v1108, %v1109
    %v1111 = vand.u32 %v1110, 4294901760
    %1112 = vmatpush1.msra.mxu0 %v1111
    %1113 = vmatprep.subr.mxu0 0.0
    %v1114 = vand.u32 %v42, 4294901760
    %v1115 = vsub.f32 %v42, %v1114
    %v1116 = vand.u32 %v1115, 4294901760
    %v1117 = vsub.f32 %v1115, %v1116
    %v1118 = vand.u32 %v1117, 4294901760
    %1119 = vmatpush1.msra.mxu0 %v1118
    %1120 = vmatprep.subr.mxu0 0.0
    %v1121 = vand.u32 %v41, 4294901760
    %v1122 = vsub.f32 %v41, %v1121
    %v1123 = vand.u32 %v1122, 4294901760
    %v1124 = vsub.f32 %v1122, %v1123
    %v1125 = vand.u32 %v1124, 4294901760
    %1126 = vmatpush1.msra.mxu0 %v1125
    %1127 = vmatprep.subr.mxu0 0.0
    %v1128 = vand.u32 %v40, 4294901760
    %v1129 = vsub.f32 %v40, %v1128
    %v1130 = vand.u32 %v1129, 4294901760
    %v1131 = vsub.f32 %v1129, %v1130
    %v1132 = vand.u32 %v1131, 4294901760
    %1133 = vmatpush1.msra.mxu0 %v1132
    %1134 = vmatprep.subr.mxu0 0.0
    %v1135 = vand.u32 %v39, 4294901760
    %v1136 = vsub.f32 %v39, %v1135
    %v1137 = vand.u32 %v1136, 4294901760
    %v1138 = vsub.f32 %v1136, %v1137
    %v1139 = vand.u32 %v1138, 4294901760
    %1140 = vmatpush1.msra.mxu0 %v1139
    %1141 = vmatprep.subr.mxu0 0.0
    %v1142 = vand.u32 %v38, 4294901760
    %v1143 = vsub.f32 %v38, %v1142
    %v1144 = vand.u32 %v1143, 4294901760
    %v1145 = vsub.f32 %v1143, %v1144
    %v1146 = vand.u32 %v1145, 4294901760
    %1147 = vmatpush1.msra.mxu0 %v1146
    %1148 = vmatprep.subr.mxu0 0.0
    %v1149 = vand.u32 %v37, 4294901760
    %v1150 = vsub.f32 %v37, %v1149
    %v1151 = vand.u32 %v1150, 4294901760
    %v1152 = vsub.f32 %v1150, %v1151
    %v1153 = vand.u32 %v1152, 4294901760
    %1154 = vmatpush1.msra.mxu0 %v1153
    %1155 = vmatprep.subr.mxu0 0.0
    %v1156 = vand.u32 %v36, 4294901760
    %v1157 = vsub.f32 %v36, %v1156
    %v1158 = vand.u32 %v1157, 4294901760
    %v1159 = vsub.f32 %v1157, %v1158
    %v1160 = vand.u32 %v1159, 4294901760
    %1161 = vmatpush1.msra.mxu0 %v1160
    %1162 = vmatprep.subr.mxu0 0.0
    %v1163 = vand.u32 %v35, 4294901760
    %v1164 = vsub.f32 %v35, %v1163
    %v1165 = vand.u32 %v1164, 4294901760
    %v1166 = vsub.f32 %v1164, %v1165
    %v1167 = vand.u32 %v1166, 4294901760
    %1168 = vmatpush1.msra.mxu0 %v1167
    %1169 = vmatprep.subr.mxu0 0.0
    %v1170 = vand.u32 %v34, 4294901760
    %v1171 = vsub.f32 %v34, %v1170
    %v1172 = vand.u32 %v1171, 4294901760
    %v1173 = vsub.f32 %v1171, %v1172
    %v1174 = vand.u32 %v1173, 4294901760
    %1175 = vmatpush1.msra.mxu0 %v1174
    %1176 = vmatprep.subr.mxu0 0.0
    %v1177 = vand.u32 %v33, 4294901760
    %v1178 = vsub.f32 %v33, %v1177
    %v1179 = vand.u32 %v1178, 4294901760
    %v1180 = vsub.f32 %v1178, %v1179
    %v1181 = vand.u32 %v1180, 4294901760
    %1182 = vmatpush1.msra.mxu0 %v1181
    %1183 = vmatprep.subr.mxu0 0.0
    %v1184 = vand.u32 %v64, 4294901760
    %v1185 = vsub.f32 %v64, %v1184
    %v1186 = vand.u32 %v1185, 4294901760
    %v1187 = vsub.f32 %v1185, %v1186
    %v1188 = vand.u32 %v1187, 4294901760
    %1189 = vmatpush2.msra.mxu0 %v1188
    %1190 = vmatprep.subr.mxu0 0.0
    %v1191 = vand.u32 %v63, 4294901760
    %v1192 = vsub.f32 %v63, %v1191
    %v1193 = vand.u32 %v1192, 4294901760
    %v1194 = vsub.f32 %v1192, %v1193
    %v1195 = vand.u32 %v1194, 4294901760
    %1196 = vmatpush2.msra.mxu0 %v1195
    %1197 = vmatprep.subr.mxu0 0.0
    %v1198 = vand.u32 %v62, 4294901760
    %v1199 = vsub.f32 %v62, %v1198
    %v1200 = vand.u32 %v1199, 4294901760
    %v1201 = vsub.f32 %v1199, %v1200
    %v1202 = vand.u32 %v1201, 4294901760
    %1203 = vmatpush2.msra.mxu0 %v1202
    %1204 = vmatprep.subr.mxu0 0.0
    %v1205 = vand.u32 %v61, 4294901760
    %v1206 = vsub.f32 %v61, %v1205
    %v1207 = vand.u32 %v1206, 4294901760
    %v1208 = vsub.f32 %v1206, %v1207
    %v1209 = vand.u32 %v1208, 4294901760
    %1210 = vmatpush2.msra.mxu0 %v1209
    %1211 = vmatprep.subr.mxu0 0.0
    %v1212 = vand.u32 %v60, 4294901760
    %v1213 = vsub.f32 %v60, %v1212
    %v1214 = vand.u32 %v1213, 4294901760
    %v1215 = vsub.f32 %v1213, %v1214
    %v1216 = vand.u32 %v1215, 4294901760
    %1217 = vmatpush2.msra.mxu0 %v1216
    %1218 = vmatprep.subr.mxu0 0.0
    %v1219 = vand.u32 %v59, 4294901760
    %v1220 = vsub.f32 %v59, %v1219
    %v1221 = vand.u32 %v1220, 4294901760
    %v1222 = vsub.f32 %v1220, %v1221
    %v1223 = vand.u32 %v1222, 4294901760
    %1224 = vmatpush2.msra.mxu0 %v1223
    %1225 = vmatprep.subr.mxu0 0.0
    %v1226 = vand.u32 %v58, 4294901760
    %v1227 = vsub.f32 %v58, %v1226
    %v1228 = vand.u32 %v1227, 4294901760
    %v1229 = vsub.f32 %v1227, %v1228
    %v1230 = vand.u32 %v1229, 4294901760
    %1231 = vmatpush2.msra.mxu0 %v1230
    %1232 = vmatprep.subr.mxu0 0.0
    %v1233 = vand.u32 %v57, 4294901760
    %v1234 = vsub.f32 %v57, %v1233
    %v1235 = vand.u32 %v1234, 4294901760
    %v1236 = vsub.f32 %v1234, %v1235
    %v1237 = vand.u32 %v1236, 4294901760
    %1238 = vmatpush2.msra.mxu0 %v1237
    %1239 = vmatprep.subr.mxu0 0.0
    %v1240 = vand.u32 %v56, 4294901760
    %v1241 = vsub.f32 %v56, %v1240
    %v1242 = vand.u32 %v1241, 4294901760
    %v1243 = vsub.f32 %v1241, %v1242
    %v1244 = vand.u32 %v1243, 4294901760
    %1245 = vmatpush2.msra.mxu0 %v1244
    %1246 = vmatprep.subr.mxu0 0.0
    %v1247 = vand.u32 %v55, 4294901760
    %v1248 = vsub.f32 %v55, %v1247
    %v1249 = vand.u32 %v1248, 4294901760
    %v1250 = vsub.f32 %v1248, %v1249
    %v1251 = vand.u32 %v1250, 4294901760
    %1252 = vmatpush2.msra.mxu0 %v1251
    %1253 = vmatprep.subr.mxu0 0.0
    %v1254 = vand.u32 %v54, 4294901760
    %v1255 = vsub.f32 %v54, %v1254
    %v1256 = vand.u32 %v1255, 4294901760
    %v1257 = vsub.f32 %v1255, %v1256
    %v1258 = vand.u32 %v1257, 4294901760
    %1259 = vmatpush2.msra.mxu0 %v1258
    %1260 = vmatprep.subr.mxu0 0.0
    %v1261 = vand.u32 %v53, 4294901760
    %v1262 = vsub.f32 %v53, %v1261
    %v1263 = vand.u32 %v1262, 4294901760
    %v1264 = vsub.f32 %v1262, %v1263
    %v1265 = vand.u32 %v1264, 4294901760
    %1266 = vmatpush2.msra.mxu0 %v1265
    %1267 = vmatprep.subr.mxu0 0.0
    %v1268 = vand.u32 %v52, 4294901760
    %v1269 = vsub.f32 %v52, %v1268
    %v1270 = vand.u32 %v1269, 4294901760
    %v1271 = vsub.f32 %v1269, %v1270
    %v1272 = vand.u32 %v1271, 4294901760
    %1273 = vmatpush2.msra.mxu0 %v1272
    %1274 = vmatprep.subr.mxu0 0.0
    %v1275 = vand.u32 %v51, 4294901760
    %v1276 = vsub.f32 %v51, %v1275
    %v1277 = vand.u32 %v1276, 4294901760
    %v1278 = vsub.f32 %v1276, %v1277
    %v1279 = vand.u32 %v1278, 4294901760
    %1280 = vmatpush2.msra.mxu0 %v1279
    %1281 = vmatprep.subr.mxu0 0.0
    %v1282 = vand.u32 %v50, 4294901760
    %v1283 = vsub.f32 %v50, %v1282
    %v1284 = vand.u32 %v1283, 4294901760
    %v1285 = vsub.f32 %v1283, %v1284
    %v1286 = vand.u32 %v1285, 4294901760
    %1287 = vmatpush2.msra.mxu0 %v1286
    %1288 = vmatprep.subr.mxu0 0.0
    %v1289 = vand.u32 %v49, 4294901760
    %v1290 = vsub.f32 %v49, %v1289
    %v1291 = vand.u32 %v1290, 4294901760
    %v1292 = vsub.f32 %v1290, %v1291
    %v1293 = vand.u32 %v1292, 4294901760
    %1294 = vmatpush2.msra.mxu0 %v1293
    %v1295 = vand.u32 %v958, 4294901760
    %1296 = vmatprep.mubr.f32.mxu0 %v1295
    %v1297 = vand.u32 %v957, 4294901760
    %1298 = vmatmul.mubr.f32.gmra.mxu0 %v1297
    %v1299 = vpop.f32.mrf.mxu0
    %v1300 = vadd.f32 %v1068, %v1299
    %v1301 = vpop.f32.mrf.mxu0
    %1302 = vdwg.mxu0
    %1303 = vmatprep.subr.mxu0 0.0
    %v1304 = vand.u32 %v48, 4294901760
    %v1305 = vsub.f32 %v48, %v1304
    %1306 = vmatpush1.msra.mxu0 %v1305
    %1307 = vmatprep.subr.mxu0 0.0
    %v1308 = vand.u32 %v47, 4294901760
    %v1309 = vsub.f32 %v47, %v1308
    %1310 = vmatpush1.msra.mxu0 %v1309
    %1311 = vmatprep.subr.mxu0 0.0
    %v1312 = vand.u32 %v46, 4294901760
    %v1313 = vsub.f32 %v46, %v1312
    %1314 = vmatpush1.msra.mxu0 %v1313
    %1315 = vmatprep.subr.mxu0 0.0
    %v1316 = vand.u32 %v45, 4294901760
    %v1317 = vsub.f32 %v45, %v1316
    %1318 = vmatpush1.msra.mxu0 %v1317
    %1319 = vmatprep.subr.mxu0 0.0
    %v1320 = vand.u32 %v44, 4294901760
    %v1321 = vsub.f32 %v44, %v1320
    %1322 = vmatpush1.msra.mxu0 %v1321
    %1323 = vmatprep.subr.mxu0 0.0
    %v1324 = vand.u32 %v43, 4294901760
    %v1325 = vsub.f32 %v43, %v1324
    %1326 = vmatpush1.msra.mxu0 %v1325
    %1327 = vmatprep.subr.mxu0 0.0
    %v1328 = vand.u32 %v42, 4294901760
    %v1329 = vsub.f32 %v42, %v1328
    %1330 = vmatpush1.msra.mxu0 %v1329
    %1331 = vmatprep.subr.mxu0 0.0
    %v1332 = vand.u32 %v41, 4294901760
    %v1333 = vsub.f32 %v41, %v1332
    %1334 = vmatpush1.msra.mxu0 %v1333
    %1335 = vmatprep.subr.mxu0 0.0
    %v1336 = vand.u32 %v40, 4294901760
    %v1337 = vsub.f32 %v40, %v1336
    %1338 = vmatpush1.msra.mxu0 %v1337
    %1339 = vmatprep.subr.mxu0 0.0
    %v1340 = vand.u32 %v39, 4294901760
    %v1341 = vsub.f32 %v39, %v1340
    %1342 = vmatpush1.msra.mxu0 %v1341
    %1343 = vmatprep.subr.mxu0 0.0
    %v1344 = vand.u32 %v38, 4294901760
    %v1345 = vsub.f32 %v38, %v1344
    %1346 = vmatpush1.msra.mxu0 %v1345
    %1347 = vmatprep.subr.mxu0 0.0
    %v1348 = vand.u32 %v37, 4294901760
    %v1349 = vsub.f32 %v37, %v1348
    %1350 = vmatpush1.msra.mxu0 %v1349
    %1351 = vmatprep.subr.mxu0 0.0
    %v1352 = vand.u32 %v36, 4294901760
    %v1353 = vsub.f32 %v36, %v1352
    %1354 = vmatpush1.msra.mxu0 %v1353
    %1355 = vmatprep.subr.mxu0 0.0
    %v1356 = vand.u32 %v35, 4294901760
    %v1357 = vsub.f32 %v35, %v1356
    %1358 = vmatpush1.msra.mxu0 %v1357
    %1359 = vmatprep.subr.mxu0 0.0
    %v1360 = vand.u32 %v34, 4294901760
    %v1361 = vsub.f32 %v34, %v1360
    %1362 = vmatpush1.msra.mxu0 %v1361
    %1363 = vmatprep.subr.mxu0 0.0
    %v1364 = vand.u32 %v33, 4294901760
    %v1365 = vsub.f32 %v33, %v1364
    %1366 = vmatpush1.msra.mxu0 %v1365
    %1367 = vmatprep.subr.mxu0 0.0
    %v1368 = vand.u32 %v64, 4294901760
    %v1369 = vsub.f32 %v64, %v1368
    %1370 = vmatpush2.msra.mxu0 %v1369
    %1371 = vmatprep.subr.mxu0 0.0
    %v1372 = vand.u32 %v63, 4294901760
    %v1373 = vsub.f32 %v63, %v1372
    %1374 = vmatpush2.msra.mxu0 %v1373
    %1375 = vmatprep.subr.mxu0 0.0
    %v1376 = vand.u32 %v62, 4294901760
    %v1377 = vsub.f32 %v62, %v1376
    %1378 = vmatpush2.msra.mxu0 %v1377
    %1379 = vmatprep.subr.mxu0 0.0
    %v1380 = vand.u32 %v61, 4294901760
    %v1381 = vsub.f32 %v61, %v1380
    %1382 = vmatpush2.msra.mxu0 %v1381
    %1383 = vmatprep.subr.mxu0 0.0
    %v1384 = vand.u32 %v60, 4294901760
    %v1385 = vsub.f32 %v60, %v1384
    %1386 = vmatpush2.msra.mxu0 %v1385
    %1387 = vmatprep.subr.mxu0 0.0
    %v1388 = vand.u32 %v59, 4294901760
    %v1389 = vsub.f32 %v59, %v1388
    %1390 = vmatpush2.msra.mxu0 %v1389
    %1391 = vmatprep.subr.mxu0 0.0
    %v1392 = vand.u32 %v58, 4294901760
    %v1393 = vsub.f32 %v58, %v1392
    %1394 = vmatpush2.msra.mxu0 %v1393
    %1395 = vmatprep.subr.mxu0 0.0
    %v1396 = vand.u32 %v57, 4294901760
    %v1397 = vsub.f32 %v57, %v1396
    %1398 = vmatpush2.msra.mxu0 %v1397
    %1399 = vmatprep.subr.mxu0 0.0
    %v1400 = vand.u32 %v56, 4294901760
    %v1401 = vsub.f32 %v56, %v1400
    %1402 = vmatpush2.msra.mxu0 %v1401
    %1403 = vmatprep.subr.mxu0 0.0
    %v1404 = vand.u32 %v55, 4294901760
    %v1405 = vsub.f32 %v55, %v1404
    %1406 = vmatpush2.msra.mxu0 %v1405
    %1407 = vmatprep.subr.mxu0 0.0
    %v1408 = vand.u32 %v54, 4294901760
    %v1409 = vsub.f32 %v54, %v1408
    %1410 = vmatpush2.msra.mxu0 %v1409
    %1411 = vmatprep.subr.mxu0 0.0
    %v1412 = vand.u32 %v53, 4294901760
    %v1413 = vsub.f32 %v53, %v1412
    %1414 = vmatpush2.msra.mxu0 %v1413
    %1415 = vmatprep.subr.mxu0 0.0
    %v1416 = vand.u32 %v52, 4294901760
    %v1417 = vsub.f32 %v52, %v1416
    %1418 = vmatpush2.msra.mxu0 %v1417
    %1419 = vmatprep.subr.mxu0 0.0
    %v1420 = vand.u32 %v51, 4294901760
    %v1421 = vsub.f32 %v51, %v1420
    %1422 = vmatpush2.msra.mxu0 %v1421
    %1423 = vmatprep.subr.mxu0 0.0
    %v1424 = vand.u32 %v50, 4294901760
    %v1425 = vsub.f32 %v50, %v1424
    %1426 = vmatpush2.msra.mxu0 %v1425
    %1427 = vmatprep.subr.mxu0 0.0
    %v1428 = vand.u32 %v49, 4294901760
    %v1429 = vsub.f32 %v49, %v1428
    %1430 = vmatpush2.msra.mxu0 %v1429
    %v1431 = vand.u32 %v958, 4294901760
    %v1432 = vsub.f32 %v958, %v1431
    %1433 = vmatprep.mubr.f32.mxu0 %v1432
    %v1434 = vand.u32 %v957, 4294901760
    %v1435 = vsub.f32 %v957, %v1434
    %1436 = vmatmul.mubr.f32.gmra.mxu0 %v1435
    %v1437 = vpop.f32.mrf.mxu0
    %v1438 = vadd.f32 %v1300, %v1437
    %v1439 = vpop.f32.mrf.mxu0
    %1440 = vdwg.mxu0
    %1441 = vmatprep.subr.mxu0 0.0
    %v1442 = vand.u32 %v48, 4294901760
    %1443 = vmatpush1.msra.mxu0 %v1442
    %1444 = vmatprep.subr.mxu0 0.0
    %v1445 = vand.u32 %v47, 4294901760
    %1446 = vmatpush1.msra.mxu0 %v1445
    %1447 = vmatprep.subr.mxu0 0.0
    %v1448 = vand.u32 %v46, 4294901760
    %1449 = vmatpush1.msra.mxu0 %v1448
    %1450 = vmatprep.subr.mxu0 0.0
    %v1451 = vand.u32 %v45, 4294901760
    %1452 = vmatpush1.msra.mxu0 %v1451
    %1453 = vmatprep.subr.mxu0 0.0
    %v1454 = vand.u32 %v44, 4294901760
    %1455 = vmatpush1.msra.mxu0 %v1454
    %1456 = vmatprep.subr.mxu0 0.0
    %v1457 = vand.u32 %v43, 4294901760
    %1458 = vmatpush1.msra.mxu0 %v1457
    %1459 = vmatprep.subr.mxu0 0.0
    %v1460 = vand.u32 %v42, 4294901760
    %1461 = vmatpush1.msra.mxu0 %v1460
    %1462 = vmatprep.subr.mxu0 0.0
    %v1463 = vand.u32 %v41, 4294901760
    %1464 = vmatpush1.msra.mxu0 %v1463
    %1465 = vmatprep.subr.mxu0 0.0
    %v1466 = vand.u32 %v40, 4294901760
    %1467 = vmatpush1.msra.mxu0 %v1466
    %1468 = vmatprep.subr.mxu0 0.0
    %v1469 = vand.u32 %v39, 4294901760
    %1470 = vmatpush1.msra.mxu0 %v1469
    %1471 = vmatprep.subr.mxu0 0.0
    %v1472 = vand.u32 %v38, 4294901760
    %1473 = vmatpush1.msra.mxu0 %v1472
    %1474 = vmatprep.subr.mxu0 0.0
    %v1475 = vand.u32 %v37, 4294901760
    %1476 = vmatpush1.msra.mxu0 %v1475
    %1477 = vmatprep.subr.mxu0 0.0
    %v1478 = vand.u32 %v36, 4294901760
    %1479 = vmatpush1.msra.mxu0 %v1478
    %1480 = vmatprep.subr.mxu0 0.0
    %v1481 = vand.u32 %v35, 4294901760
    %1482 = vmatpush1.msra.mxu0 %v1481
    %1483 = vmatprep.subr.mxu0 0.0
    %v1484 = vand.u32 %v34, 4294901760
    %1485 = vmatpush1.msra.mxu0 %v1484
    %1486 = vmatprep.subr.mxu0 0.0
    %v1487 = vand.u32 %v33, 4294901760
    %1488 = vmatpush1.msra.mxu0 %v1487
    %1489 = vmatprep.subr.mxu0 0.0
    %v1490 = vand.u32 %v64, 4294901760
    %1491 = vmatpush2.msra.mxu0 %v1490
    %1492 = vmatprep.subr.mxu0 0.0
    %v1493 = vand.u32 %v63, 4294901760
    %1494 = vmatpush2.msra.mxu0 %v1493
    %1495 = vmatprep.subr.mxu0 0.0
    %v1496 = vand.u32 %v62, 4294901760
    %1497 = vmatpush2.msra.mxu0 %v1496
    %1498 = vmatprep.subr.mxu0 0.0
    %v1499 = vand.u32 %v61, 4294901760
    %1500 = vmatpush2.msra.mxu0 %v1499
    %1501 = vmatprep.subr.mxu0 0.0
    %v1502 = vand.u32 %v60, 4294901760
    %1503 = vmatpush2.msra.mxu0 %v1502
    %1504 = vmatprep.subr.mxu0 0.0
    %v1505 = vand.u32 %v59, 4294901760
    %1506 = vmatpush2.msra.mxu0 %v1505
    %1507 = vmatprep.subr.mxu0 0.0
    %v1508 = vand.u32 %v58, 4294901760
    %1509 = vmatpush2.msra.mxu0 %v1508
    %1510 = vmatprep.subr.mxu0 0.0
    %v1511 = vand.u32 %v57, 4294901760
    %1512 = vmatpush2.msra.mxu0 %v1511
    %1513 = vmatprep.subr.mxu0 0.0
    %v1514 = vand.u32 %v56, 4294901760
    %1515 = vmatpush2.msra.mxu0 %v1514
    %1516 = vmatprep.subr.mxu0 0.0
    %v1517 = vand.u32 %v55, 4294901760
    %1518 = vmatpush2.msra.mxu0 %v1517
    %1519 = vmatprep.subr.mxu0 0.0
    %v1520 = vand.u32 %v54, 4294901760
    %1521 = vmatpush2.msra.mxu0 %v1520
    %1522 = vmatprep.subr.mxu0 0.0
    %v1523 = vand.u32 %v53, 4294901760
    %1524 = vmatpush2.msra.mxu0 %v1523
    %1525 = vmatprep.subr.mxu0 0.0
    %v1526 = vand.u32 %v52, 4294901760
    %1527 = vmatpush2.msra.mxu0 %v1526
    %1528 = vmatprep.subr.mxu0 0.0
    %v1529 = vand.u32 %v51, 4294901760
    %1530 = vmatpush2.msra.mxu0 %v1529
    %1531 = vmatprep.subr.mxu0 0.0
    %v1532 = vand.u32 %v50, 4294901760
    %1533 = vmatpush2.msra.mxu0 %v1532
    %1534 = vmatprep.subr.mxu0 0.0
    %v1535 = vand.u32 %v49, 4294901760
    %1536 = vmatpush2.msra.mxu0 %v1535
    %v1537 = vand.u32 %v958, 4294901760
    %v1538 = vsub.f32 %v958, %v1537
    %v1539 = vand.u32 %v1538, 4294901760
    %1540 = vmatprep.mubr.f32.mxu0 %v1539
    %v1541 = vand.u32 %v957, 4294901760
    %v1542 = vsub.f32 %v957, %v1541
    %v1543 = vand.u32 %v1542, 4294901760
    %1544 = vmatmul.mubr.f32.gmra.mxu0 %v1543
    %v1545 = vpop.f32.mrf.mxu0
    %v1546 = vadd.f32 %v1438, %v1545
    %v1547 = vpop.f32.mrf.mxu0
    %1548 = vdwg.mxu0
    %1549 = vmatprep.subr.mxu0 0.0
    %v1550 = vand.u32 %v48, 4294901760
    %v1551 = vsub.f32 %v48, %v1550
    %v1552 = vand.u32 %v1551, 4294901760
    %1553 = vmatpush1.msra.mxu0 %v1552
    %1554 = vmatprep.subr.mxu0 0.0
    %v1555 = vand.u32 %v47, 4294901760
    %v1556 = vsub.f32 %v47, %v1555
    %v1557 = vand.u32 %v1556, 4294901760
    %1558 = vmatpush1.msra.mxu0 %v1557
    %1559 = vmatprep.subr.mxu0 0.0
    %v1560 = vand.u32 %v46, 4294901760
    %v1561 = vsub.f32 %v46, %v1560
    %v1562 = vand.u32 %v1561, 4294901760
    %1563 = vmatpush1.msra.mxu0 %v1562
    %1564 = vmatprep.subr.mxu0 0.0
    %v1565 = vand.u32 %v45, 4294901760
    %v1566 = vsub.f32 %v45, %v1565
    %v1567 = vand.u32 %v1566, 4294901760
    %1568 = vmatpush1.msra.mxu0 %v1567
    %1569 = vmatprep.subr.mxu0 0.0
    %v1570 = vand.u32 %v44, 4294901760
    %v1571 = vsub.f32 %v44, %v1570
    %v1572 = vand.u32 %v1571, 4294901760
    %1573 = vmatpush1.msra.mxu0 %v1572
    %1574 = vmatprep.subr.mxu0 0.0
    %v1575 = vand.u32 %v43, 4294901760
    %v1576 = vsub.f32 %v43, %v1575
    %v1577 = vand.u32 %v1576, 4294901760
    %1578 = vmatpush1.msra.mxu0 %v1577
    %1579 = vmatprep.subr.mxu0 0.0
    %v1580 = vand.u32 %v42, 4294901760
    %v1581 = vsub.f32 %v42, %v1580
    %v1582 = vand.u32 %v1581, 4294901760
    %1583 = vmatpush1.msra.mxu0 %v1582
    %1584 = vmatprep.subr.mxu0 0.0
    %v1585 = vand.u32 %v41, 4294901760
    %v1586 = vsub.f32 %v41, %v1585
    %v1587 = vand.u32 %v1586, 4294901760
    %1588 = vmatpush1.msra.mxu0 %v1587
    %1589 = vmatprep.subr.mxu0 0.0
    %v1590 = vand.u32 %v40, 4294901760
    %v1591 = vsub.f32 %v40, %v1590
    %v1592 = vand.u32 %v1591, 4294901760
    %1593 = vmatpush1.msra.mxu0 %v1592
    %1594 = vmatprep.subr.mxu0 0.0
    %v1595 = vand.u32 %v39, 4294901760
    %v1596 = vsub.f32 %v39, %v1595
    %v1597 = vand.u32 %v1596, 4294901760
    %1598 = vmatpush1.msra.mxu0 %v1597
    %1599 = vmatprep.subr.mxu0 0.0
    %v1600 = vand.u32 %v38, 4294901760
    %v1601 = vsub.f32 %v38, %v1600
    %v1602 = vand.u32 %v1601, 4294901760
    %1603 = vmatpush1.msra.mxu0 %v1602
    %1604 = vmatprep.subr.mxu0 0.0
    %v1605 = vand.u32 %v37, 4294901760
    %v1606 = vsub.f32 %v37, %v1605
    %v1607 = vand.u32 %v1606, 4294901760
    %1608 = vmatpush1.msra.mxu0 %v1607
    %1609 = vmatprep.subr.mxu0 0.0
    %v1610 = vand.u32 %v36, 4294901760
    %v1611 = vsub.f32 %v36, %v1610
    %v1612 = vand.u32 %v1611, 4294901760
    %1613 = vmatpush1.msra.mxu0 %v1612
    %1614 = vmatprep.subr.mxu0 0.0
    %v1615 = vand.u32 %v35, 4294901760
    %v1616 = vsub.f32 %v35, %v1615
    %v1617 = vand.u32 %v1616, 4294901760
    %1618 = vmatpush1.msra.mxu0 %v1617
    %1619 = vmatprep.subr.mxu0 0.0
    %v1620 = vand.u32 %v34, 4294901760
    %v1621 = vsub.f32 %v34, %v1620
    %v1622 = vand.u32 %v1621, 4294901760
    %1623 = vmatpush1.msra.mxu0 %v1622
    %1624 = vmatprep.subr.mxu0 0.0
    %v1625 = vand.u32 %v33, 4294901760
    %v1626 = vsub.f32 %v33, %v1625
    %v1627 = vand.u32 %v1626, 4294901760
    %1628 = vmatpush1.msra.mxu0 %v1627
    %1629 = vmatprep.subr.mxu0 0.0
    %v1630 = vand.u32 %v64, 4294901760
    %v1631 = vsub.f32 %v64, %v1630
    %v1632 = vand.u32 %v1631, 4294901760
    %1633 = vmatpush2.msra.mxu0 %v1632
    %1634 = vmatprep.subr.mxu0 0.0
    %v1635 = vand.u32 %v63, 4294901760
    %v1636 = vsub.f32 %v63, %v1635
    %v1637 = vand.u32 %v1636, 4294901760
    %1638 = vmatpush2.msra.mxu0 %v1637
    %1639 = vmatprep.subr.mxu0 0.0
    %v1640 = vand.u32 %v62, 4294901760
    %v1641 = vsub.f32 %v62, %v1640
    %v1642 = vand.u32 %v1641, 4294901760
    %1643 = vmatpush2.msra.mxu0 %v1642
    %1644 = vmatprep.subr.mxu0 0.0
    %v1645 = vand.u32 %v61, 4294901760
    %v1646 = vsub.f32 %v61, %v1645
    %v1647 = vand.u32 %v1646, 4294901760
    %1648 = vmatpush2.msra.mxu0 %v1647
    %1649 = vmatprep.subr.mxu0 0.0
    %v1650 = vand.u32 %v60, 4294901760
    %v1651 = vsub.f32 %v60, %v1650
    %v1652 = vand.u32 %v1651, 4294901760
    %1653 = vmatpush2.msra.mxu0 %v1652
    %1654 = vmatprep.subr.mxu0 0.0
    %v1655 = vand.u32 %v59, 4294901760
    %v1656 = vsub.f32 %v59, %v1655
    %v1657 = vand.u32 %v1656, 4294901760
    %1658 = vmatpush2.msra.mxu0 %v1657
    %1659 = vmatprep.subr.mxu0 0.0
    %v1660 = vand.u32 %v58, 4294901760
    %v1661 = vsub.f32 %v58, %v1660
    %v1662 = vand.u32 %v1661, 4294901760
    %1663 = vmatpush2.msra.mxu0 %v1662
    %1664 = vmatprep.subr.mxu0 0.0
    %v1665 = vand.u32 %v57, 4294901760
    %v1666 = vsub.f32 %v57, %v1665
    %v1667 = vand.u32 %v1666, 4294901760
    %1668 = vmatpush2.msra.mxu0 %v1667
    %1669 = vmatprep.subr.mxu0 0.0
    %v1670 = vand.u32 %v56, 4294901760
    %v1671 = vsub.f32 %v56, %v1670
    %v1672 = vand.u32 %v1671, 4294901760
    %1673 = vmatpush2.msra.mxu0 %v1672
    %1674 = vmatprep.subr.mxu0 0.0
    %v1675 = vand.u32 %v55, 4294901760
    %v1676 = vsub.f32 %v55, %v1675
    %v1677 = vand.u32 %v1676, 4294901760
    %1678 = vmatpush2.msra.mxu0 %v1677
    %1679 = vmatprep.subr.mxu0 0.0
    %v1680 = vand.u32 %v54, 4294901760
    %v1681 = vsub.f32 %v54, %v1680
    %v1682 = vand.u32 %v1681, 4294901760
    %1683 = vmatpush2.msra.mxu0 %v1682
    %1684 = vmatprep.subr.mxu0 0.0
    %v1685 = vand.u32 %v53, 4294901760
    %v1686 = vsub.f32 %v53, %v1685
    %v1687 = vand.u32 %v1686, 4294901760
    %1688 = vmatpush2.msra.mxu0 %v1687
    %1689 = vmatprep.subr.mxu0 0.0
    %v1690 = vand.u32 %v52, 4294901760
    %v1691 = vsub.f32 %v52, %v1690
    %v1692 = vand.u32 %v1691, 4294901760
    %1693 = vmatpush2.msra.mxu0 %v1692
    %1694 = vmatprep.subr.mxu0 0.0
    %v1695 = vand.u32 %v51, 4294901760
    %v1696 = vsub.f32 %v51, %v1695
    %v1697 = vand.u32 %v1696, 4294901760
    %1698 = vmatpush2.msra.mxu0 %v1697
    %1699 = vmatprep.subr.mxu0 0.0
    %v1700 = vand.u32 %v50, 4294901760
    %v1701 = vsub.f32 %v50, %v1700
    %v1702 = vand.u32 %v1701, 4294901760
    %1703 = vmatpush2.msra.mxu0 %v1702
    %1704 = vmatprep.subr.mxu0 0.0
    %v1705 = vand.u32 %v49, 4294901760
    %v1706 = vsub.f32 %v49, %v1705
    %v1707 = vand.u32 %v1706, 4294901760
    %1708 = vmatpush2.msra.mxu0 %v1707
    %v1709 = vand.u32 %v958, 4294901760
    %1710 = vmatprep.mubr.f32.mxu0 %v1709
    %v1711 = vand.u32 %v957, 4294901760
    %1712 = vmatmul.mubr.f32.gmra.mxu0 %v1711
    %v1713 = vpop.f32.mrf.mxu0
    %v1714 = vadd.f32 %v1546, %v1713
    %v1715 = vpop.f32.mrf.mxu0
    %1716 = vdwg.mxu0
    %1717 = vmatprep.subr.mxu0 0.0
    %v1718 = vand.u32 %v48, 4294901760
    %1719 = vmatpush1.msra.mxu0 %v1718
    %1720 = vmatprep.subr.mxu0 0.0
    %v1721 = vand.u32 %v47, 4294901760
    %1722 = vmatpush1.msra.mxu0 %v1721
    %1723 = vmatprep.subr.mxu0 0.0
    %v1724 = vand.u32 %v46, 4294901760
    %1725 = vmatpush1.msra.mxu0 %v1724
    %1726 = vmatprep.subr.mxu0 0.0
    %v1727 = vand.u32 %v45, 4294901760
    %1728 = vmatpush1.msra.mxu0 %v1727
    %1729 = vmatprep.subr.mxu0 0.0
    %v1730 = vand.u32 %v44, 4294901760
    %1731 = vmatpush1.msra.mxu0 %v1730
    %1732 = vmatprep.subr.mxu0 0.0
    %v1733 = vand.u32 %v43, 4294901760
    %1734 = vmatpush1.msra.mxu0 %v1733
    %1735 = vmatprep.subr.mxu0 0.0
    %v1736 = vand.u32 %v42, 4294901760
    %1737 = vmatpush1.msra.mxu0 %v1736
    %1738 = vmatprep.subr.mxu0 0.0
    %v1739 = vand.u32 %v41, 4294901760
    %1740 = vmatpush1.msra.mxu0 %v1739
    %1741 = vmatprep.subr.mxu0 0.0
    %v1742 = vand.u32 %v40, 4294901760
    %1743 = vmatpush1.msra.mxu0 %v1742
    %1744 = vmatprep.subr.mxu0 0.0
    %v1745 = vand.u32 %v39, 4294901760
    %1746 = vmatpush1.msra.mxu0 %v1745
    %1747 = vmatprep.subr.mxu0 0.0
    %v1748 = vand.u32 %v38, 4294901760
    %1749 = vmatpush1.msra.mxu0 %v1748
    %1750 = vmatprep.subr.mxu0 0.0
    %v1751 = vand.u32 %v37, 4294901760
    %1752 = vmatpush1.msra.mxu0 %v1751
    %1753 = vmatprep.subr.mxu0 0.0
    %v1754 = vand.u32 %v36, 4294901760
    %1755 = vmatpush1.msra.mxu0 %v1754
    %1756 = vmatprep.subr.mxu0 0.0
    %v1757 = vand.u32 %v35, 4294901760
    %1758 = vmatpush1.msra.mxu0 %v1757
    %1759 = vmatprep.subr.mxu0 0.0
    %v1760 = vand.u32 %v34, 4294901760
    %1761 = vmatpush1.msra.mxu0 %v1760
    %1762 = vmatprep.subr.mxu0 0.0
    %v1763 = vand.u32 %v33, 4294901760
    %1764 = vmatpush1.msra.mxu0 %v1763
    %1765 = vmatprep.subr.mxu0 0.0
    %v1766 = vand.u32 %v64, 4294901760
    %1767 = vmatpush2.msra.mxu0 %v1766
    %1768 = vmatprep.subr.mxu0 0.0
    %v1769 = vand.u32 %v63, 4294901760
    %1770 = vmatpush2.msra.mxu0 %v1769
    %1771 = vmatprep.subr.mxu0 0.0
    %v1772 = vand.u32 %v62, 4294901760
    %1773 = vmatpush2.msra.mxu0 %v1772
    %1774 = vmatprep.subr.mxu0 0.0
    %v1775 = vand.u32 %v61, 4294901760
    %1776 = vmatpush2.msra.mxu0 %v1775
    %1777 = vmatprep.subr.mxu0 0.0
    %v1778 = vand.u32 %v60, 4294901760
    %1779 = vmatpush2.msra.mxu0 %v1778
    %1780 = vmatprep.subr.mxu0 0.0
    %v1781 = vand.u32 %v59, 4294901760
    %1782 = vmatpush2.msra.mxu0 %v1781
    %1783 = vmatprep.subr.mxu0 0.0
    %v1784 = vand.u32 %v58, 4294901760
    %1785 = vmatpush2.msra.mxu0 %v1784
    %1786 = vmatprep.subr.mxu0 0.0
    %v1787 = vand.u32 %v57, 4294901760
    %1788 = vmatpush2.msra.mxu0 %v1787
    %1789 = vmatprep.subr.mxu0 0.0
    %v1790 = vand.u32 %v56, 4294901760
    %1791 = vmatpush2.msra.mxu0 %v1790
    %1792 = vmatprep.subr.mxu0 0.0
    %v1793 = vand.u32 %v55, 4294901760
    %1794 = vmatpush2.msra.mxu0 %v1793
    %1795 = vmatprep.subr.mxu0 0.0
    %v1796 = vand.u32 %v54, 4294901760
    %1797 = vmatpush2.msra.mxu0 %v1796
    %1798 = vmatprep.subr.mxu0 0.0
    %v1799 = vand.u32 %v53, 4294901760
    %1800 = vmatpush2.msra.mxu0 %v1799
    %1801 = vmatprep.subr.mxu0 0.0
    %v1802 = vand.u32 %v52, 4294901760
    %1803 = vmatpush2.msra.mxu0 %v1802
    %1804 = vmatprep.subr.mxu0 0.0
    %v1805 = vand.u32 %v51, 4294901760
    %1806 = vmatpush2.msra.mxu0 %v1805
    %1807 = vmatprep.subr.mxu0 0.0
    %v1808 = vand.u32 %v50, 4294901760
    %1809 = vmatpush2.msra.mxu0 %v1808
    %1810 = vmatprep.subr.mxu0 0.0
    %v1811 = vand.u32 %v49, 4294901760
    %1812 = vmatpush2.msra.mxu0 %v1811
    %v1813 = vand.u32 %v958, 4294901760
    %1814 = vmatprep.mubr.f32.mxu0 %v1813
    %v1815 = vand.u32 %v957, 4294901760
    %1816 = vmatmul.mubr.f32.gmra.mxu0 %v1815
    %v1817 = vpop.f32.mrf.mxu0
    %v1818 = vadd.f32 %v1714, %v1817
    %v1819 = vpop.f32.mrf.mxu0
    %1820 = vdwg.mxu0
    %vm1821 = vcmask 64512
    %1822 = vst.msk [vmem:[#allocation2] sm:$0xff] %vm1821, %v1818
    // Predicated region
    $region14: #{tpu_custom_call.1} parent=1 // pred_check
      _
    $region15: #{tpu_custom_call.1} parent=1 // pred_check_branch
      %1824 = sbr.rel (0) target = $region17
    $region16: #{tpu_custom_call.1} parent=1 // pred_region
      %s1826 = ssub.s32 128, 128
      %1827 = vsyncadd [#allocation3], %s1826
      %s1829 = sshll.u32 [#allocation2], 4
      %s1830 = int_to_ptr.vmem [resolvable:$true] %s1829
      %1832 = dma.vmem_to_hbm [thread:$0]  %s1830, 128, %s3, [#allocation3]
    $region17: #{tpu_custom_call.1} parent=1 // pred_fallthru
      _
    // Predicated region
    $region18: #{tpu_custom_call.1} parent=1 // pred_check
      _
    $region19: #{tpu_custom_call.1} parent=1 // pred_check_branch
      %1834 = sbr.rel (0) target = $region21
    $region20: #{tpu_custom_call.1} parent=1 // pred_region
      %1835 = dma.done [#allocation3], 128
    $region21: #{tpu_custom_call.1} parent=1 // pred_fallthru
      _
    %1836 = vsyncpa [#allocation3], 1

</llo_original>
